<compile_context>
chip_gen: v5e
topology: v5e:2x2
jax: 0.10.0
libtpu: 0.0.40
codegen_flags: <defaults>
</compile_context>

<pallas_src>
import functools

import numpy as np

import jax
import jax.numpy as jnp
from jax.experimental import pallas as pl
from jax.experimental.pallas import tpu as pltpu


NEG_SLOPE = 0.01   # F.leaky_relu default negative slope
DROP_P = 0.1       # nn.Dropout(0.1)
LANE = 128
MAX_TB = 512       # max batch-tile rows per grid step


def _round_up(x, m):
    return (x + m - 1) // m * m


def _cdiv(a, b):
    return -(-a // b)


def _leaky_relu(x):
    return jnp.where(x > 0, x, NEG_SLOPE * x)


def _make_kernel(training: bool, p: float, tb: int):
    """Fused MLP kernel; `training` / `p` / `tb` are compile-time constants."""
    assert 0.0 <= p < 1.0, "dropout p must be in [0, 1) (uint32 threshold)"
    scale = 1.0 / (1.0 - p)
    # numpy scalar -> jaxpr literal (NOT a captured jax-array constant).
    thresh = np.uint32(int(round(p * (2 ** 32))))     # P(bits < thresh) = p

    def kernel(seed_ref, x_ref,
               w1_ref, b1_ref, w2_ref, b2_ref, w3_ref, b3_ref, w4_ref, b4_ref,
               o_ref):
        use_dropout = training and p > 0.0

        if use_dropout:
            row0 = (pl.program_id(0) * tb).astype(jnp.uint32)
            seed = seed_ref[0].astype(jnp.uint32)

            def base_mix(shape):
                # Hoisted once per distinct shape; JAX does not CSE
                # broadcasted_iota, so we reuse this for dropout layers 2+3.
                rows = jax.lax.broadcasted_iota(jnp.uint32, shape, 0) + row0
                cols = jax.lax.broadcasted_iota(jnp.uint32, shape, 1)
                return ((rows * np.uint32(0x9E3779B1))
                        ^ (cols * np.uint32(0x85EBCA77)))

            mix_in = base_mix(x_ref.shape)                  # (TB, in_dim)
            mix_hid = base_mix((tb, w1_ref.shape[1]))       # (TB, 512)
        else:
            mix_in = mix_hid = None

        def dropout(x, layer, mix):
            if not use_dropout:
                return x
            salt = seed + np.uint32((layer * 0xC2B2AE3D) & 0xFFFFFFFF)
            h = mix + salt
            h = h ^ (h >> 16)
            h = h * np.uint32(0x7FEB352D)   # single-round fmix (trimmed)
            h = h ^ (h >> 15)
            keep = h >= thresh                           # P(keep) = 1 - p
            return jnp.where(keep, x * scale, 0.0)       # mask+scale fused

        def dense(h, w_ref, b_ref):
            # bf16 MXU operands (weights pre-cast in wrapper), f32 accumulation.
            return jnp.dot(h.astype(jnp.bfloat16), w_ref[...],
                           preferred_element_type=jnp.float32) + b_ref[...]

        h = dropout(x_ref[...], 1, mix_in)
        h = _leaky_relu(dense(h, w1_ref, b1_ref))
        h = dropout(h, 2, mix_hid)
        h = _leaky_relu(dense(h, w2_ref, b2_ref))
        h = dropout(h, 3, mix_hid)
        h = _leaky_relu(dense(h, w3_ref, b3_ref))
        o_ref[...] = dense(h, w4_ref, b4_ref)   # lane-dense (TB, 128) store

    return kernel


@functools.partial(jax.jit, static_argnames=("training",))
def dropout_mlp(x, params, seed, *, training: bool = True):
    """Forward pass of DropoutMLP.

    x:      (B, in_dim*2) float32
    params: dict with w1..w4 of shape (in, out) and b1..b4 of shape (1, out)
    seed:   (1,) int32 dropout seed (derive a fresh one per training step).
    """
    # Pre-cast weights to bf16 once in the wrapper (halves weight VMEM/DMA and
    # removes the per-grid-step VPU cast).  Biases stay f32 (added post-acc).
    w1 = params["w1"].astype(jnp.bfloat16)
    w2 = params["w2"].astype(jnp.bfloat16)
    w3 = params["w3"].astype(jnp.bfloat16)
    w4 = params["w4"].astype(jnp.bfloat16)
    b1, b2, b3, b4 = params["b1"], params["b2"], params["b3"], params["b4"]

    B, in_dim = x.shape
    out_dim = params["w4"].shape[1]

    # Batch tiling: up to MAX_TB rows per step; if more than one tile is
    # needed, use an even tile count so v7x's two TensorCores share the
    # "parallel" batch axis evenly.
    if B <= MAX_TB:
        TB = _round_up(B, 8)
    else:
        nt = _cdiv(B, MAX_TB)
        nt += nt % 2
        TB = _round_up(_cdiv(B, nt), 8)
    Bp = _round_up(B, TB)
    if Bp != B:
        x = jnp.pad(x, ((0, Bp - B), (0, 0)))

    # Pad the narrow head (out_dim=2) to exactly one lane-dense 128-wide slab.
    NP = LANE
    assert out_dim <= NP
    w4p = jnp.pad(w4, ((0, 0), (0, NP - out_dim)))
    b4p = jnp.pad(b4, ((0, 0), (0, NP - out_dim)))

    n_tiles = Bp // TB
    h1, h2, h3 = w1.shape[1], w2.shape[1], w3.shape[1]

    def full(a):   # whole array, VMEM-resident across all grid steps
        return pl.BlockSpec(a.shape, lambda i, s: (0, 0))
    # NOTE: constant-index weight blocks could take pipeline_mode=pl.Buffered(1)
    # to avoid pointless double-buffering; skipped (minor, VMEM is not tight).

    grid_spec = pltpu.PrefetchScalarGridSpec(
        num_scalar_prefetch=1,                      # seed -> SMEM
        grid=(n_tiles,),
        in_specs=[
            pl.BlockSpec((TB, in_dim), lambda i, s: (i, 0)),
            full(w1), full(b1),
            full(w2), full(b2),
            full(w3), full(b3),
            full(w4p), full(b4p),
        ],
        out_specs=pl.BlockSpec((TB, NP), lambda i, s: (i, 0)),
    )

    flops = 2 * Bp * (in_dim * h1 + h1 * h2 + h2 * h3 + h3 * NP)
    bytes_accessed = (
        x.size * 4
        + 2 * (w1.size + w2.size + w3.size + w4p.size)          # bf16 weights
        + 4 * (b1.size + b2.size + b3.size + b4p.size)          # f32 biases
        + Bp * NP * 4)                                           # f32 output

    out = pl.pallas_call(
        _make_kernel(training, DROP_P, TB),
        out_shape=jax.ShapeDtypeStruct((Bp, NP), jnp.float32),
        grid_spec=grid_spec,
        compiler_params=pltpu.CompilerParams(
            dimension_semantics=("parallel",)),
        cost_estimate=pl.CostEstimate(
            flops=flops, transcendentals=0, bytes_accessed=bytes_accessed),
    )(seed, x, w1, b1, w2, b2, w3, b3, w4p, b4p)

    return out[:B, :out_dim]


def _init_linear(key, fan_in, fan_out):
    """Matches nn.Linear's uniform(-1/sqrt(fan_in), 1/sqrt(fan_in)) init."""
    kw, kb = jax.random.split(key)
    bound = 1.0 / jnp.sqrt(jnp.float32(fan_in))
    w = jax.random.uniform(kw, (fan_in, fan_out), jnp.float32, -bound, bound)
    b = jax.random.uniform(kb, (1, fan_out), jnp.float32, -bound, bound)
    return w, b


def _ref_forward_eval(x, params):
    """Pure-JAX eval-mode reference with the same bf16-operand matmul math."""
    def dense(h, w, b):
        return jnp.dot(h.astype(jnp.bfloat16), w.astype(jnp.bfloat16),
                       preferred_element_type=jnp.float32) + b
    h = _leaky_relu(dense(x, params["w1"], params["b1"]))
    h = _leaky_relu(dense(h, params["w2"], params["b2"]))
    h = _leaky_relu(dense(h, params["w3"], params["b3"]))
    return dense(h, params["w4"], params["b4"])


if __name__ == "__main__":
    # configs.MLP.In_Dim = 16  -> input dim = 32 ; configs.MLP.Binary = 2
    IN_DIM = 16
    BINARY = 2
    BATCH = 8   # demo size; scale to >=256 rows for real MXU utilization

    key = jax.random.PRNGKey(0)
    kx, k1, k2, k3, k4 = jax.random.split(key, 5)

    x = jax.random.normal(kx, (BATCH, IN_DIM * 2), jnp.float32)

    w1, b1 = _init_linear(k1, IN_DIM * 2, 512)
    w2, b2 = _init_linear(k2, 512, 512)
    w3, b3 = _init_linear(k3, 512, 256)
    w4, b4 = _init_linear(k4, 256, BINARY)
    params = dict(w1=w1, b1=b1, w2=w2, b2=b2, w3=w3, b3=b3, w4=w4, b4=b4)

    seed = jnp.array([1234], dtype=jnp.int32)

    # Training mode (dropout active, deterministic for this seed).
    pred = jax.block_until_ready(dropout_mlp(x, params, seed, training=True))
    assert pred.shape == (BATCH, BINARY) and pred.dtype == jnp.float32
    assert bool(jnp.all(jnp.isfinite(pred)))

    # Eval mode (dropout = identity) against a pure-JAX reference.
    pred_eval = jax.block_until_ready(
        dropout_mlp(x, params, seed, training=False))
    ref = _ref_forward_eval(x, params)
    assert jnp.allclose(pred_eval, ref, atol=5e-3, rtol=5e-3), (
        float(jnp.max(jnp.abs(pred_eval - ref))))

    print("KERNEL_OK")
</pallas_src>

<mosaic_0001>
module attributes {stable_mosaic.version = 11 : i64} {
  func.func @kernel(%arg0: i32, %arg1: memref<1xi32, #tpu.memory_space<smem>>, %arg2: memref<8x32xf32, #tpu.memory_space<vmem>>, %arg3: memref<32x512xbf16, #tpu.memory_space<vmem>>, %arg4: memref<1x512xf32, #tpu.memory_space<vmem>>, %arg5: memref<512x512xbf16, #tpu.memory_space<vmem>>, %arg6: memref<1x512xf32, #tpu.memory_space<vmem>>, %arg7: memref<512x256xbf16, #tpu.memory_space<vmem>>, %arg8: memref<1x256xf32, #tpu.memory_space<vmem>>, %arg9: memref<256x128xbf16, #tpu.memory_space<vmem>>, %arg10: memref<1x128xf32, #tpu.memory_space<vmem>>, %arg11: memref<8x128xf32, #tpu.memory_space<vmem>>) attributes {dimension_semantics = [#tpu.dimension_semantics<parallel>], iteration_bounds = array<i64: 1>, scalar_prefetch = 1 : i64, scratch_operands = 0 : i64, tpu.core_type = #tpu.core_type<tc>, window_params = [{transform_indices = @transform_0, window_bounds = array<i64: 8, 32>}, {pipeline_mode = #tpu.pipeline_mode<synchronous>, transform_indices = @transform_1, window_bounds = array<i64: 32, 512>}, {pipeline_mode = #tpu.pipeline_mode<synchronous>, transform_indices = @transform_2, window_bounds = array<i64: 1, 512>}, {pipeline_mode = #tpu.pipeline_mode<synchronous>, transform_indices = @transform_3, window_bounds = array<i64: 512, 512>}, {pipeline_mode = #tpu.pipeline_mode<synchronous>, transform_indices = @transform_4, window_bounds = array<i64: 1, 512>}, {pipeline_mode = #tpu.pipeline_mode<synchronous>, transform_indices = @transform_5, window_bounds = array<i64: 512, 256>}, {pipeline_mode = #tpu.pipeline_mode<synchronous>, transform_indices = @transform_6, window_bounds = array<i64: 1, 256>}, {pipeline_mode = #tpu.pipeline_mode<synchronous>, transform_indices = @transform_7, window_bounds = array<i64: 256, 128>}, {pipeline_mode = #tpu.pipeline_mode<synchronous>, transform_indices = @transform_8, window_bounds = array<i64: 1, 128>}, {transform_indices = @transform_9, window_bounds = array<i64: 8, 128>}]} {
    %c8_i32 = arith.constant 8 : i32
    %0 = arith.muli %arg0, %c8_i32 : i32
    %c0 = arith.constant 0 : index
    %1 = memref.load %arg1[%c0] : memref<1xi32, #tpu.memory_space<smem>>
    %2 = tpu.iota {dimensions = array<i32: 0>} : vector<8x32xi32>
    %3 = vector.broadcast %0 : i32 to vector<8x32xi32>
    %4 = arith.addi %2, %3 : vector<8x32xi32>
    %5 = tpu.iota {dimensions = array<i32: 1>} : vector<8x32xi32>
    %c-1640531535_i32 = arith.constant -1640531535 : i32
    %6 = vector.broadcast %c-1640531535_i32 : i32 to vector<8x32xi32>
    %7 = arith.muli %4, %6 : vector<8x32xi32>
    %c-2048144777_i32 = arith.constant -2048144777 : i32
    %8 = vector.broadcast %c-2048144777_i32 : i32 to vector<8x32xi32>
    %9 = arith.muli %5, %8 : vector<8x32xi32>
    %10 = arith.xori %7, %9 : vector<8x32xi32>
    %11 = tpu.iota {dimensions = array<i32: 0>} : vector<8x512xi32>
    %12 = vector.broadcast %0 : i32 to vector<8x512xi32>
    %13 = arith.addi %11, %12 : vector<8x512xi32>
    %14 = tpu.iota {dimensions = array<i32: 1>} : vector<8x512xi32>
    %c-1640531535_i32_0 = arith.constant -1640531535 : i32
    %15 = vector.broadcast %c-1640531535_i32_0 : i32 to vector<8x512xi32>
    %16 = arith.muli %13, %15 : vector<8x512xi32>
    %c-2048144777_i32_1 = arith.constant -2048144777 : i32
    %17 = vector.broadcast %c-2048144777_i32_1 : i32 to vector<8x512xi32>
    %18 = arith.muli %14, %17 : vector<8x512xi32>
    %19 = arith.xori %16, %18 : vector<8x512xi32>
    %c0_2 = arith.constant 0 : index
    %c0_3 = arith.constant 0 : index
    %20 = vector.load %arg2[%c0_2, %c0_3] : memref<8x32xf32, #tpu.memory_space<vmem>>, vector<8x32xf32>
    %c-1028477379_i32 = arith.constant -1028477379 : i32
    %21 = arith.addi %1, %c-1028477379_i32 : i32
    %22 = vector.broadcast %21 : i32 to vector<8x32xi32>
    %23 = arith.addi %10, %22 : vector<8x32xi32>
    %c16_i32 = arith.constant 16 : i32
    %24 = vector.broadcast %c16_i32 : i32 to vector<8x32xi32>
    %25 = arith.shrui %23, %24 : vector<8x32xi32>
    %26 = arith.xori %23, %25 : vector<8x32xi32>
    %c2146121005_i32 = arith.constant 2146121005 : i32
    %27 = vector.broadcast %c2146121005_i32 : i32 to vector<8x32xi32>
    %28 = arith.muli %26, %27 : vector<8x32xi32>
    %c15_i32 = arith.constant 15 : i32
    %29 = vector.broadcast %c15_i32 : i32 to vector<8x32xi32>
    %30 = arith.shrui %28, %29 : vector<8x32xi32>
    %31 = arith.xori %28, %30 : vector<8x32xi32>
    %c429496730_i32 = arith.constant 429496730 : i32
    %32 = vector.broadcast %c429496730_i32 : i32 to vector<8x32xi32>
    %33 = arith.cmpi uge, %31, %32 : vector<8x32xi32>
    %cst = arith.constant 1.11111116 : f32
    %34 = vector.broadcast %cst : f32 to vector<8x32xf32>
    %35 = arith.mulf %20, %34 : vector<8x32xf32>
    %cst_4 = arith.constant 0.000000e+00 : f32
    %36 = vector.broadcast %cst_4 : f32 to vector<8x32xf32>
    %37 = arith.select %33, %35, %36 : vector<8x32xi1>, vector<8x32xf32>
    %38 = arith.truncf %37 : vector<8x32xf32> to vector<8x32xbf16>
    %c0_5 = arith.constant 0 : index
    %c0_6 = arith.constant 0 : index
    %39 = vector.load %arg3[%c0_5, %c0_6] : memref<32x512xbf16, #tpu.memory_space<vmem>>, vector<32x512xbf16>
    %cst_7 = arith.constant dense<0.000000e+00> : vector<8x512xf32>
    %40 = tpu.matmul %38, %39, %cst_7 {dimension_numbers = #tpu.dot_dimension_numbers<[1], [0], [0], [1], [0, 0, 1, 1], [], []>} : vector<8x32xbf16>, vector<32x512xbf16>, vector<8x512xf32> -> vector<8x512xf32>
    %c0_8 = arith.constant 0 : index
    %c0_9 = arith.constant 0 : index
    %41 = vector.load %arg4[%c0_8, %c0_9] : memref<1x512xf32, #tpu.memory_space<vmem>>, vector<1x512xf32>
    %42 = vector.broadcast %41 : vector<1x512xf32> to vector<8x512xf32>
    %43 = arith.addf %40, %42 : vector<8x512xf32>
    %cst_10 = arith.constant 0.000000e+00 : f32
    %44 = vector.broadcast %cst_10 : f32 to vector<8x512xf32>
    %45 = arith.cmpf ogt, %43, %44 : vector<8x512xf32>
    %cst_11 = arith.constant 0.00999999977 : f32
    %46 = vector.broadcast %cst_11 : f32 to vector<8x512xf32>
    %47 = arith.mulf %46, %43 : vector<8x512xf32>
    %48 = arith.select %45, %43, %47 : vector<8x512xi1>, vector<8x512xf32>
    %c-2056954758_i32 = arith.constant -2056954758 : i32
    %49 = arith.addi %1, %c-2056954758_i32 : i32
    %50 = vector.broadcast %49 : i32 to vector<8x512xi32>
    %51 = arith.addi %19, %50 : vector<8x512xi32>
    %c16_i32_12 = arith.constant 16 : i32
    %52 = vector.broadcast %c16_i32_12 : i32 to vector<8x512xi32>
    %53 = arith.shrui %51, %52 : vector<8x512xi32>
    %54 = arith.xori %51, %53 : vector<8x512xi32>
    %c2146121005_i32_13 = arith.constant 2146121005 : i32
    %55 = vector.broadcast %c2146121005_i32_13 : i32 to vector<8x512xi32>
    %56 = arith.muli %54, %55 : vector<8x512xi32>
    %c15_i32_14 = arith.constant 15 : i32
    %57 = vector.broadcast %c15_i32_14 : i32 to vector<8x512xi32>
    %58 = arith.shrui %56, %57 : vector<8x512xi32>
    %59 = arith.xori %56, %58 : vector<8x512xi32>
    %c429496730_i32_15 = arith.constant 429496730 : i32
    %60 = vector.broadcast %c429496730_i32_15 : i32 to vector<8x512xi32>
    %61 = arith.cmpi uge, %59, %60 : vector<8x512xi32>
    %cst_16 = arith.constant 1.11111116 : f32
    %62 = vector.broadcast %cst_16 : f32 to vector<8x512xf32>
    %63 = arith.mulf %48, %62 : vector<8x512xf32>
    %cst_17 = arith.constant 0.000000e+00 : f32
    %64 = vector.broadcast %cst_17 : f32 to vector<8x512xf32>
    %65 = arith.select %61, %63, %64 : vector<8x512xi1>, vector<8x512xf32>
    %66 = arith.truncf %65 : vector<8x512xf32> to vector<8x512xbf16>
    %c0_18 = arith.constant 0 : index
    %c0_19 = arith.constant 0 : index
    %67 = vector.load %arg5[%c0_18, %c0_19] : memref<512x512xbf16, #tpu.memory_space<vmem>>, vector<512x512xbf16>
    %cst_20 = arith.constant dense<0.000000e+00> : vector<8x512xf32>
    %68 = tpu.matmul %66, %67, %cst_20 {dimension_numbers = #tpu.dot_dimension_numbers<[1], [0], [0], [1], [0, 0, 1, 1], [], []>} : vector<8x512xbf16>, vector<512x512xbf16>, vector<8x512xf32> -> vector<8x512xf32>
    %c0_21 = arith.constant 0 : index
    %c0_22 = arith.constant 0 : index
    %69 = vector.load %arg6[%c0_21, %c0_22] : memref<1x512xf32, #tpu.memory_space<vmem>>, vector<1x512xf32>
    %70 = vector.broadcast %69 : vector<1x512xf32> to vector<8x512xf32>
    %71 = arith.addf %68, %70 : vector<8x512xf32>
    %cst_23 = arith.constant 0.000000e+00 : f32
    %72 = vector.broadcast %cst_23 : f32 to vector<8x512xf32>
    %73 = arith.cmpf ogt, %71, %72 : vector<8x512xf32>
    %cst_24 = arith.constant 0.00999999977 : f32
    %74 = vector.broadcast %cst_24 : f32 to vector<8x512xf32>
    %75 = arith.mulf %74, %71 : vector<8x512xf32>
    %76 = arith.select %73, %71, %75 : vector<8x512xi1>, vector<8x512xf32>
    %c1209535159_i32 = arith.constant 1209535159 : i32
    %77 = arith.addi %1, %c1209535159_i32 : i32
    %78 = vector.broadcast %77 : i32 to vector<8x512xi32>
    %79 = arith.addi %19, %78 : vector<8x512xi32>
    %c16_i32_25 = arith.constant 16 : i32
    %80 = vector.broadcast %c16_i32_25 : i32 to vector<8x512xi32>
    %81 = arith.shrui %79, %80 : vector<8x512xi32>
    %82 = arith.xori %79, %81 : vector<8x512xi32>
    %c2146121005_i32_26 = arith.constant 2146121005 : i32
    %83 = vector.broadcast %c2146121005_i32_26 : i32 to vector<8x512xi32>
    %84 = arith.muli %82, %83 : vector<8x512xi32>
    %c15_i32_27 = arith.constant 15 : i32
    %85 = vector.broadcast %c15_i32_27 : i32 to vector<8x512xi32>
    %86 = arith.shrui %84, %85 : vector<8x512xi32>
    %87 = arith.xori %84, %86 : vector<8x512xi32>
    %c429496730_i32_28 = arith.constant 429496730 : i32
    %88 = vector.broadcast %c429496730_i32_28 : i32 to vector<8x512xi32>
    %89 = arith.cmpi uge, %87, %88 : vector<8x512xi32>
    %cst_29 = arith.constant 1.11111116 : f32
    %90 = vector.broadcast %cst_29 : f32 to vector<8x512xf32>
    %91 = arith.mulf %76, %90 : vector<8x512xf32>
    %cst_30 = arith.constant 0.000000e+00 : f32
    %92 = vector.broadcast %cst_30 : f32 to vector<8x512xf32>
    %93 = arith.select %89, %91, %92 : vector<8x512xi1>, vector<8x512xf32>
    %94 = arith.truncf %93 : vector<8x512xf32> to vector<8x512xbf16>
    %c0_31 = arith.constant 0 : index
    %c0_32 = arith.constant 0 : index
    %95 = vector.load %arg7[%c0_31, %c0_32] : memref<512x256xbf16, #tpu.memory_space<vmem>>, vector<512x256xbf16>
    %cst_33 = arith.constant dense<0.000000e+00> : vector<8x256xf32>
    %96 = tpu.matmul %94, %95, %cst_33 {dimension_numbers = #tpu.dot_dimension_numbers<[1], [0], [0], [1], [0, 0, 1, 1], [], []>} : vector<8x512xbf16>, vector<512x256xbf16>, vector<8x256xf32> -> vector<8x256xf32>
    %c0_34 = arith.constant 0 : index
    %c0_35 = arith.constant 0 : index
    %97 = vector.load %arg8[%c0_34, %c0_35] : memref<1x256xf32, #tpu.memory_space<vmem>>, vector<1x256xf32>
    %98 = vector.broadcast %97 : vector<1x256xf32> to vector<8x256xf32>
    %99 = arith.addf %96, %98 : vector<8x256xf32>
    %cst_36 = arith.constant 0.000000e+00 : f32
    %100 = vector.broadcast %cst_36 : f32 to vector<8x256xf32>
    %101 = arith.cmpf ogt, %99, %100 : vector<8x256xf32>
    %cst_37 = arith.constant 0.00999999977 : f32
    %102 = vector.broadcast %cst_37 : f32 to vector<8x256xf32>
    %103 = arith.mulf %102, %99 : vector<8x256xf32>
    %104 = arith.select %101, %99, %103 : vector<8x256xi1>, vector<8x256xf32>
    %105 = arith.truncf %104 : vector<8x256xf32> to vector<8x256xbf16>
    %c0_38 = arith.constant 0 : index
    %c0_39 = arith.constant 0 : index
    %106 = vector.load %arg9[%c0_38, %c0_39] : memref<256x128xbf16, #tpu.memory_space<vmem>>, vector<256x128xbf16>
    %cst_40 = arith.constant dense<0.000000e+00> : vector<8x128xf32>
    %107 = tpu.matmul %105, %106, %cst_40 {dimension_numbers = #tpu.dot_dimension_numbers<[1], [0], [0], [1], [0, 0, 1, 1], [], []>} : vector<8x256xbf16>, vector<256x128xbf16>, vector<8x128xf32> -> vector<8x128xf32>
    %c0_41 = arith.constant 0 : index
    %c0_42 = arith.constant 0 : index
    %108 = vector.load %arg10[%c0_41, %c0_42] : memref<1x128xf32, #tpu.memory_space<vmem>>, vector<1x128xf32>
    %109 = vector.broadcast %108 : vector<1x128xf32> to vector<8x128xf32>
    %110 = arith.addf %107, %109 : vector<8x128xf32>
    %c0_43 = arith.constant 0 : index
    %c0_44 = arith.constant 0 : index
    %111 = vector.load %arg11[%c0_43, %c0_44] : memref<8x128xf32, #tpu.memory_space<vmem>>, vector<8x128xf32>
    tpu.vector_store %arg11[%c0_43, %c0_44], %110 {strides = array<i32>} : memref<8x128xf32, #tpu.memory_space<vmem>>, vector<8x128xf32>,
    return
  }
  func.func @transform_0(%arg0: i32, %arg1: memref<1xi32, #tpu.memory_space<smem>>) -> (i32, i32) {
    %c0_i32 = arith.constant 0 : i32
    %c0_i32_0 = arith.constant 0 : i32
    return %arg0, %c0_i32 : i32, i32
  }
  func.func @transform_1(%arg0: i32, %arg1: memref<1xi32, #tpu.memory_space<smem>>) -> (i32, i32) {
    %c0_i32 = arith.constant 0 : i32
    %c0_i32_0 = arith.constant 0 : i32
    %c0_i32_1 = arith.constant 0 : i32
    return %c0_i32, %c0_i32_0 : i32, i32
  }
  func.func @transform_2(%arg0: i32, %arg1: memref<1xi32, #tpu.memory_space<smem>>) -> (i32, i32) {
    %c0_i32 = arith.constant 0 : i32
    %c0_i32_0 = arith.constant 0 : i32
    %c0_i32_1 = arith.constant 0 : i32
    return %c0_i32, %c0_i32_0 : i32, i32
  }
  func.func @transform_3(%arg0: i32, %arg1: memref<1xi32, #tpu.memory_space<smem>>) -> (i32, i32) {
    %c0_i32 = arith.constant 0 : i32
    %c0_i32_0 = arith.constant 0 : i32
    %c0_i32_1 = arith.constant 0 : i32
    return %c0_i32, %c0_i32_0 : i32, i32
  }
  func.func @transform_4(%arg0: i32, %arg1: memref<1xi32, #tpu.memory_space<smem>>) -> (i32, i32) {
    %c0_i32 = arith.constant 0 : i32
    %c0_i32_0 = arith.constant 0 : i32
    %c0_i32_1 = arith.constant 0 : i32
    return %c0_i32, %c0_i32_0 : i32, i32
  }
  func.func @transform_5(%arg0: i32, %arg1: memref<1xi32, #tpu.memory_space<smem>>) -> (i32, i32) {
    %c0_i32 = arith.constant 0 : i32
    %c0_i32_0 = arith.constant 0 : i32
    %c0_i32_1 = arith.constant 0 : i32
    return %c0_i32, %c0_i32_0 : i32, i32
  }
  func.func @transform_6(%arg0: i32, %arg1: memref<1xi32, #tpu.memory_space<smem>>) -> (i32, i32) {
    %c0_i32 = arith.constant 0 : i32
    %c0_i32_0 = arith.constant 0 : i32
    %c0_i32_1 = arith.constant 0 : i32
    return %c0_i32, %c0_i32_0 : i32, i32
  }
  func.func @transform_7(%arg0: i32, %arg1: memref<1xi32, #tpu.memory_space<smem>>) -> (i32, i32) {
    %c0_i32 = arith.constant 0 : i32
    %c0_i32_0 = arith.constant 0 : i32
    %c0_i32_1 = arith.constant 0 : i32
    return %c0_i32, %c0_i32_0 : i32, i32
  }
  func.func @transform_8(%arg0: i32, %arg1: memref<1xi32, #tpu.memory_space<smem>>) -> (i32, i32) {
    %c0_i32 = arith.constant 0 : i32
    %c0_i32_0 = arith.constant 0 : i32
    %c0_i32_1 = arith.constant 0 : i32
    return %c0_i32, %c0_i32_0 : i32, i32
  }
  func.func @transform_9(%arg0: i32, %arg1: memref<1xi32, #tpu.memory_space<smem>>) -> (i32, i32) {
    %c0_i32 = arith.constant 0 : i32
    %c0_i32_0 = arith.constant 0 : i32
    return %arg0, %c0_i32 : i32, i32
  }
}

</mosaic_0001>

<llo_original>
// kernel: dropout_mlp.1
$region0: #{dropout_mlp.1}
  #allocation0 [shape = 'u32[]', space=smem, size = 0x4, offset = 0x4, fixed_abs, tag = 'smem constant byte address 0x4 - core index']
  #allocation1 [shape = 'u32[72,128]{1,0:T(1,128)}', space=vmem, size = 0x9000, scoped, tag = 'internal scratch']
  #allocation2 [shape = 's32[1]{0}', space=sflag, size = 0x4, scoped, tag = 'scoped memory for dropout_mlp.1']
  #allocation3 [shape = 's32[1]{0:T(128)S(6)}', space=smem, size = 0x200, scoped, tag = 'prefetched SMEM operand 0']
  %s0 = inlined_call_operand.<no memory space> [shape: s32[1], index: 0, kind: input, shape index: {}]
  %s1 = inlined_call_operand.vmem [shape: f32[8,32], index: 1, kind: input, shape index: {}]
  %s2 = inlined_call_operand.vmem [shape: bf16[32,512], index: 2, kind: input, shape index: {}]
  %s3 = inlined_call_operand.vmem [shape: f32[1,512], index: 3, kind: input, shape index: {}]
  %s4 = inlined_call_operand.vmem [shape: bf16[512,512], index: 4, kind: input, shape index: {}]
  %s5 = inlined_call_operand.vmem [shape: f32[1,512], index: 5, kind: input, shape index: {}]
  %s6 = inlined_call_operand.vmem [shape: bf16[512,256], index: 6, kind: input, shape index: {}]
  %s7 = inlined_call_operand.vmem [shape: f32[1,256], index: 7, kind: input, shape index: {}]
  %s8 = inlined_call_operand.vmem [shape: bf16[256,128], index: 8, kind: input, shape index: {}]
  %s9 = inlined_call_operand.vmem [shape: f32[1,128], index: 9, kind: input, shape index: {}]
  %s10 = inlined_call_operand.vmem [shape: f32[8,128], index: 10, kind: output, shape index: {}]
  %s11 = sld [smem:[#allocation0]]
  $region46: #{dropout_mlp.1} parent=0
    _
  %s13 = ssub.s32 1, %s11
  %s14 = scalar_select 0, %s13, %s11
  %15 = sst [smem:[#allocation3]] %s0
  // Predicated region
  $region2: #{dropout_mlp.1} parent=0 // pred_check
    _
  $region3: #{dropout_mlp.1} parent=0 // pred_check_branch
    %17 = sbr.rel (0) target = $region5
  $region4: #{dropout_mlp.1} parent=0 // pred_region
    _
  $region5: #{dropout_mlp.1} parent=0 // pred_fallthru
    _
  // Predicated region
  $region6: #{dropout_mlp.1} parent=0 // pred_check
    _
  $region7: #{dropout_mlp.1} parent=0 // pred_check_branch
    %19 = sbr.rel (0) target = $region9
  $region8: #{dropout_mlp.1} parent=0 // pred_region
    _
  $region9: #{dropout_mlp.1} parent=0 // pred_fallthru
    _
  // Predicated region
  $region10: #{dropout_mlp.1} parent=0 // pred_check
    _
  $region11: #{dropout_mlp.1} parent=0 // pred_check_branch
    %21 = sbr.rel (0) target = $region13
  $region12: #{dropout_mlp.1} parent=0 // pred_region
    _
  $region13: #{dropout_mlp.1} parent=0 // pred_fallthru
    _
  // Predicated region
  $region14: #{dropout_mlp.1} parent=0 // pred_check
    _
  $region15: #{dropout_mlp.1} parent=0 // pred_check_branch
    %23 = sbr.rel (0) target = $region17
  $region16: #{dropout_mlp.1} parent=0 // pred_region
    _
  $region17: #{dropout_mlp.1} parent=0 // pred_fallthru
    _
  // Predicated region
  $region18: #{dropout_mlp.1} parent=0 // pred_check
    _
  $region19: #{dropout_mlp.1} parent=0 // pred_check_branch
    %25 = sbr.rel (0) target = $region21
  $region20: #{dropout_mlp.1} parent=0 // pred_region
    _
  $region21: #{dropout_mlp.1} parent=0 // pred_fallthru
    _
  // Predicated region
  $region22: #{dropout_mlp.1} parent=0 // pred_check
    _
  $region23: #{dropout_mlp.1} parent=0 // pred_check_branch
    %27 = sbr.rel (0) target = $region25
  $region24: #{dropout_mlp.1} parent=0 // pred_region
    _
  $region25: #{dropout_mlp.1} parent=0 // pred_fallthru
    _
  // Predicated region
  $region26: #{dropout_mlp.1} parent=0 // pred_check
    _
  $region27: #{dropout_mlp.1} parent=0 // pred_check_branch
    %29 = sbr.rel (0) target = $region29
  $region28: #{dropout_mlp.1} parent=0 // pred_region
    _
  $region29: #{dropout_mlp.1} parent=0 // pred_fallthru
    _
  // Predicated region
  $region30: #{dropout_mlp.1} parent=0 // pred_check
    _
  $region31: #{dropout_mlp.1} parent=0 // pred_check_branch
    %31 = sbr.rel (0) target = $region33
  $region32: #{dropout_mlp.1} parent=0 // pred_region
    _
  $region33: #{dropout_mlp.1} parent=0 // pred_fallthru
    _
  // Predicated region
  $region34: #{dropout_mlp.1} parent=0 // pred_check
    _
  $region35: #{dropout_mlp.1} parent=0 // pred_check_branch
    %33 = sbr.rel (0) target = $region37
  $region36: #{dropout_mlp.1} parent=0 // pred_region
    _
  $region37: #{dropout_mlp.1} parent=0 // pred_fallthru
    _
  %s35 = smul.u32 0, 8
  %s36 = sld [smem:[#allocation3]]
  %v37 = vlaneseq
  %v38 = vshrl.u32 %v37, 7
  %v39 = vstv %s35
  %v40 = vadd.s32 %v38, %v39
  %v41 = vlaneseq
  %v42 = vand.u32 %v41, 127
  %v43 = vmul.u32 %v40, 2654435761
  %v44 = vmul.u32 %v42, 2246822519
  %v45 = vxor.u32 %v43, %v44
  %v46 = vadd.s32 %v42, 128
  %v47 = vadd.s32 %v42, 256
  %v48 = vadd.s32 %v42, 384
  %v49 = vmul.u32 %v46, 2246822519
  %v50 = vmul.u32 %v47, 2246822519
  %v51 = vmul.u32 %v48, 2246822519
  %v52 = vxor.u32 %v43, %v49
  %v53 = vxor.u32 %v43, %v50
  %v54 = vxor.u32 %v43, %v51
  %v55 = vld [vmem:[%s1] sm:$0xff]
  %s56 = sadd.s32 %s36, 3266489917
  %v57 = vstv %s56
  %v58 = vadd.s32 %v45, %v57
  %v59 = vshrl.u32 %v58, 16
  %v60 = vxor.u32 %v58, %v59
  %v61 = vmul.u32 %v60, 2146121005
  %v62 = vshrl.u32 %v61, 15
  %v63 = vxor.u32 %v61, %v62
  %v64 = vadd.s32 %v63, 2147483648
  %vm66 = vcmp.ge.s32.totalorder %v64, 2576980378
  %v67 = vmul.f32 %v55, 1.1111112
  %v68 = vsel %vm66, %v67, 0.0
  %v69 = vpack.c.bf16 %v68, %v68
  %v70 = vld [vmem:[%s2] sm:$0xff]
  %v71 = vld [vmem:[%s2 + $0x8] sm:$0xff]
  %v72 = vld [vmem:[%s2 + $0x10] sm:$0xff]
  %v73 = vld [vmem:[%s2 + $0x18] sm:$0xff]
  %v74 = vld [vmem:[%s2 + $0x20] sm:$0xff]
  %v75 = vld [vmem:[%s2 + $0x28] sm:$0xff]
  %v76 = vld [vmem:[%s2 + $0x30] sm:$0xff]
  %v77 = vld [vmem:[%s2 + $0x38] sm:$0xff]
  %v78 = vld [vmem:[%s3] sm:$0xf]
  %v80 = vperm.slane %v78, 0
  %v81 = vperm.slane %v78, 1
  %v82 = vperm.slane %v78, 2
  %v83 = vperm.slane %v78, 3
  %v96 = vunpack.c.l.b16 %v70
  %v97 = vunpack.c.h.b16 %v70
  %v98 = vunpack.c.l.b16 %v71
  %v99 = vunpack.c.h.b16 %v71
  %v100 = vunpack.c.l.b16 %v72
  %v101 = vunpack.c.h.b16 %v72
  %v102 = vunpack.c.l.b16 %v73
  %v103 = vunpack.c.h.b16 %v73
  %v104 = vunpack.c.l.b16 %v74
  %v105 = vunpack.c.h.b16 %v74
  %v106 = vunpack.c.l.b16 %v75
  %v107 = vunpack.c.h.b16 %v75
  %v108 = vunpack.c.l.b16 %v76
  %v109 = vunpack.c.h.b16 %v76
  %v110 = vunpack.c.l.b16 %v77
  %v111 = vunpack.c.h.b16 %v77
  %v112 = vpack.c.b16 %v100, %v96
  %v113 = vpack.c.b16 %v101, %v97
  %v114 = vpack.c.b16 %v102, %v98
  %v115 = vpack.c.b16 %v103, %v99
  %v116 = vpack.c.b16 %v108, %v104
  %v117 = vpack.c.b16 %v109, %v105
  %v118 = vpack.c.b16 %v110, %v106
  %v119 = vpack.c.b16 %v111, %v107
  %vm128 = vcmask 261120
  %v130 = vsel %vm128, %v69, 0
  %132 = vmatpush.bf16.msra.mxu0 0
  %133 = vmatpush.bf16.msra.mxu0 0
  %134 = vmatpush.bf16.msra.mxu0 0
  %135 = vmatpush.bf16.msra.mxu0 0
  %136 = vmatpush.bf16.msra.mxu0 0
  %137 = vmatpush.bf16.msra.mxu0 0
  %138 = vmatpush.bf16.msra.mxu0 %v116
  %139 = vmatpush.bf16.msra.mxu0 %v112
  %140 = vmatmul.bf16.gmra.mxu0 %v130
  %v141 = vpop.f32.mrf.mxu0
  %v142 = vadd.f32 %v80, %v141
  %v143 = vpop.f32.mrf.mxu0
  %144 = vdwg.mxu0
  %145 = vmatpush.bf16.msra.mxu0 0
  %146 = vmatpush.bf16.msra.mxu0 0
  %147 = vmatpush.bf16.msra.mxu0 0
  %148 = vmatpush.bf16.msra.mxu0 0
  %149 = vmatpush.bf16.msra.mxu0 0
  %150 = vmatpush.bf16.msra.mxu0 0
  %151 = vmatpush.bf16.msra.mxu0 %v117
  %152 = vmatpush.bf16.msra.mxu0 %v113
  %153 = vmatmul.bf16.gmra.mxu0 %v130
  %v154 = vpop.f32.mrf.mxu0
  %v155 = vadd.f32 %v81, %v154
  %v156 = vpop.f32.mrf.mxu0
  %157 = vdwg.mxu0
  %158 = vmatpush.bf16.msra.mxu0 0
  %159 = vmatpush.bf16.msra.mxu0 0
  %160 = vmatpush.bf16.msra.mxu0 0
  %161 = vmatpush.bf16.msra.mxu0 0
  %162 = vmatpush.bf16.msra.mxu0 0
  %163 = vmatpush.bf16.msra.mxu0 0
  %164 = vmatpush.bf16.msra.mxu0 %v118
  %165 = vmatpush.bf16.msra.mxu0 %v114
  %166 = vmatmul.bf16.gmra.mxu0 %v130
  %v167 = vpop.f32.mrf.mxu0
  %v168 = vadd.f32 %v82, %v167
  %v169 = vpop.f32.mrf.mxu0
  %170 = vdwg.mxu0
  %171 = vmatpush.bf16.msra.mxu0 0
  %172 = vmatpush.bf16.msra.mxu0 0
  %173 = vmatpush.bf16.msra.mxu0 0
  %174 = vmatpush.bf16.msra.mxu0 0
  %175 = vmatpush.bf16.msra.mxu0 0
  %176 = vmatpush.bf16.msra.mxu0 0
  %177 = vmatpush.bf16.msra.mxu0 %v119
  %178 = vmatpush.bf16.msra.mxu0 %v115
  %179 = vmatmul.bf16.gmra.mxu0 %v130
  %v180 = vpop.f32.mrf.mxu0
  %v181 = vadd.f32 %v83, %v180
  %v182 = vpop.f32.mrf.mxu0
  %183 = vdwg.mxu0
  %vm184 = vcmp.gt.f32.partialorder %v142, 0.0
  %vm185 = vcmp.gt.f32.partialorder %v155, 0.0
  %vm186 = vcmp.gt.f32.partialorder %v168, 0.0
  %vm187 = vcmp.gt.f32.partialorder %v181, 0.0
  %v188 = vmul.f32 %v142, 0.01
  %v189 = vmul.f32 %v155, 0.01
  %v190 = vmul.f32 %v168, 0.01
  %v191 = vmul.f32 %v181, 0.01
  %v192 = vsel %vm184, %v142, %v188
  %v193 = vsel %vm185, %v155, %v189
  %v194 = vsel %vm186, %v168, %v190
  %v195 = vsel %vm187, %v181, %v191
  %s196 = sadd.s32 %s36, 2238012538
  %v197 = vstv %s196
  %v198 = vadd.s32 %v45, %v197
  %v199 = vadd.s32 %v52, %v197
  %v200 = vadd.s32 %v53, %v197
  %v201 = vadd.s32 %v54, %v197
  %v202 = vshrl.u32 %v198, 16
  %v203 = vshrl.u32 %v199, 16
  %v204 = vshrl.u32 %v200, 16
  %v205 = vshrl.u32 %v201, 16
  %v206 = vxor.u32 %v198, %v202
  %v207 = vxor.u32 %v199, %v203
  %v208 = vxor.u32 %v200, %v204
  %v209 = vxor.u32 %v201, %v205
  %v210 = vmul.u32 %v206, 2146121005
  %v211 = vmul.u32 %v207, 2146121005
  %v212 = vmul.u32 %v208, 2146121005
  %v213 = vmul.u32 %v209, 2146121005
  %v214 = vshrl.u32 %v210, 15
  %v215 = vshrl.u32 %v211, 15
  %v216 = vshrl.u32 %v212, 15
  %v217 = vshrl.u32 %v213, 15
  %v218 = vxor.u32 %v210, %v214
  %v219 = vxor.u32 %v211, %v215
  %v220 = vxor.u32 %v212, %v216
  %v221 = vxor.u32 %v213, %v217
  %v222 = vadd.s32 %v218, 2147483648
  %vm224 = vcmp.ge.s32.totalorder %v222, 2576980378
  %v225 = vadd.s32 %v219, 2147483648
  %vm227 = vcmp.ge.s32.totalorder %v225, 2576980378
  %v228 = vadd.s32 %v220, 2147483648
  %vm230 = vcmp.ge.s32.totalorder %v228, 2576980378
  %v231 = vadd.s32 %v221, 2147483648
  %vm233 = vcmp.ge.s32.totalorder %v231, 2576980378
  %v234 = vmul.f32 %v192, 1.1111112
  %v235 = vmul.f32 %v193, 1.1111112
  %v236 = vmul.f32 %v194, 1.1111112
  %v237 = vmul.f32 %v195, 1.1111112
  %v238 = vsel %vm224, %v234, 0.0
  %v239 = vsel %vm227, %v235, 0.0
  %v240 = vsel %vm230, %v236, 0.0
  %v241 = vsel %vm233, %v237, 0.0
  %v242 = vpack.c.bf16 %v238, %v238
  %v243 = vpack.c.bf16 %v239, %v239
  %v244 = vpack.c.bf16 %v240, %v240
  %v245 = vpack.c.bf16 %v241, %v241
  %v246 = vld [vmem:[%s4] sm:$0xff]
  %v247 = vld [vmem:[%s4 + $0x8] sm:$0xff]
  %v248 = vld [vmem:[%s4 + $0x10] sm:$0xff]
  %v249 = vld [vmem:[%s4 + $0x18] sm:$0xff]
  %v250 = vld [vmem:[%s4 + $0x20] sm:$0xff]
  %v251 = vld [vmem:[%s4 + $0x28] sm:$0xff]
  %v252 = vld [vmem:[%s4 + $0x30] sm:$0xff]
  %v253 = vld [vmem:[%s4 + $0x38] sm:$0xff]
  %v254 = vld [vmem:[%s4 + $0x40] sm:$0xff]
  %v255 = vld [vmem:[%s4 + $0x48] sm:$0xff]
  %v256 = vld [vmem:[%s4 + $0x50] sm:$0xff]
  %v257 = vld [vmem:[%s4 + $0x58] sm:$0xff]
  %v258 = vld [vmem:[%s4 + $0x60] sm:$0xff]
  %v259 = vld [vmem:[%s4 + $0x68] sm:$0xff]
  %v260 = vld [vmem:[%s4 + $0x70] sm:$0xff]
  %v261 = vld [vmem:[%s4 + $0x78] sm:$0xff]
  %v262 = vld [vmem:[%s4 + $0x80] sm:$0xff]
  %v263 = vld [vmem:[%s4 + $0x88] sm:$0xff]
  %v264 = vld [vmem:[%s4 + $0x90] sm:$0xff]
  %v265 = vld [vmem:[%s4 + $0x98] sm:$0xff]
  %v266 = vld [vmem:[%s4 + $0xa0] sm:$0xff]
  %v267 = vld [vmem:[%s4 + $0xa8] sm:$0xff]
  %v268 = vld [vmem:[%s4 + $0xb0] sm:$0xff]
  %v269 = vld [vmem:[%s4 + $0xb8] sm:$0xff]
  %v270 = vld [vmem:[%s4 + $0xc0] sm:$0xff]
  %v271 = vld [vmem:[%s4 + $0xc8] sm:$0xff]
  %v272 = vld [vmem:[%s4 + $0xd0] sm:$0xff]
  %v273 = vld [vmem:[%s4 + $0xd8] sm:$0xff]
  %v274 = vld [vmem:[%s4 + $0xe0] sm:$0xff]
  %v275 = vld [vmem:[%s4 + $0xe8] sm:$0xff]
  %v276 = vld [vmem:[%s4 + $0xf0] sm:$0xff]
  %v277 = vld [vmem:[%s4 + $0xf8] sm:$0xff]
  %v278 = vld [vmem:[%s4 + $0x100] sm:$0xff]
  %v279 = vld [vmem:[%s4 + $0x108] sm:$0xff]
  %v280 = vld [vmem:[%s4 + $0x110] sm:$0xff]
  %v281 = vld [vmem:[%s4 + $0x118] sm:$0xff]
  %v282 = vld [vmem:[%s4 + $0x120] sm:$0xff]
  %v283 = vld [vmem:[%s4 + $0x128] sm:$0xff]
  %v284 = vld [vmem:[%s4 + $0x130] sm:$0xff]
  %v285 = vld [vmem:[%s4 + $0x138] sm:$0xff]
  %v286 = vld [vmem:[%s4 + $0x140] sm:$0xff]
  %v287 = vld [vmem:[%s4 + $0x148] sm:$0xff]
  %v288 = vld [vmem:[%s4 + $0x150] sm:$0xff]
  %v289 = vld [vmem:[%s4 + $0x158] sm:$0xff]
  %v290 = vld [vmem:[%s4 + $0x160] sm:$0xff]
  %v291 = vld [vmem:[%s4 + $0x168] sm:$0xff]
  %v292 = vld [vmem:[%s4 + $0x170] sm:$0xff]
  %v293 = vld [vmem:[%s4 + $0x178] sm:$0xff]
  %v294 = vld [vmem:[%s4 + $0x180] sm:$0xff]
  %v295 = vld [vmem:[%s4 + $0x188] sm:$0xff]
  %v296 = vld [vmem:[%s4 + $0x190] sm:$0xff]
  %v297 = vld [vmem:[%s4 + $0x198] sm:$0xff]
  %v298 = vld [vmem:[%s4 + $0x1a0] sm:$0xff]
  %v299 = vld [vmem:[%s4 + $0x1a8] sm:$0xff]
  %v300 = vld [vmem:[%s4 + $0x1b0] sm:$0xff]
  %v301 = vld [vmem:[%s4 + $0x1b8] sm:$0xff]
  %v302 = vld [vmem:[%s4 + $0x1c0] sm:$0xff]
  %v303 = vld [vmem:[%s4 + $0x1c8] sm:$0xff]
  %v304 = vld [vmem:[%s4 + $0x1d0] sm:$0xff]
  %v305 = vld [vmem:[%s4 + $0x1d8] sm:$0xff]
  %v306 = vld [vmem:[%s4 + $0x1e0] sm:$0xff]
  %v307 = vld [vmem:[%s4 + $0x1e8] sm:$0xff]
  %v308 = vld [vmem:[%s4 + $0x1f0] sm:$0xff]
  %v309 = vld [vmem:[%s4 + $0x1f8] sm:$0xff]
  %v310 = vld [vmem:[%s4 + $0x200] sm:$0xff]
  %v311 = vld [vmem:[%s4 + $0x208] sm:$0xff]
  %v312 = vld [vmem:[%s4 + $0x210] sm:$0xff]
  %v313 = vld [vmem:[%s4 + $0x218] sm:$0xff]
  %v314 = vld [vmem:[%s4 + $0x220] sm:$0xff]
  %v315 = vld [vmem:[%s4 + $0x228] sm:$0xff]
  %v316 = vld [vmem:[%s4 + $0x230] sm:$0xff]
  %v317 = vld [vmem:[%s4 + $0x238] sm:$0xff]
  %v318 = vld [vmem:[%s4 + $0x240] sm:$0xff]
  %v319 = vld [vmem:[%s4 + $0x248] sm:$0xff]
  %v320 = vld [vmem:[%s4 + $0x250] sm:$0xff]
  %v321 = vld [vmem:[%s4 + $0x258] sm:$0xff]
  %v322 = vld [vmem:[%s4 + $0x260] sm:$0xff]
  %v323 = vld [vmem:[%s4 + $0x268] sm:$0xff]
  %v324 = vld [vmem:[%s4 + $0x270] sm:$0xff]
  %v325 = vld [vmem:[%s4 + $0x278] sm:$0xff]
  %v326 = vld [vmem:[%s4 + $0x280] sm:$0xff]
  %v327 = vld [vmem:[%s4 + $0x288] sm:$0xff]
  %v328 = vld [vmem:[%s4 + $0x290] sm:$0xff]
  %v329 = vld [vmem:[%s4 + $0x298] sm:$0xff]
  %v330 = vld [vmem:[%s4 + $0x2a0] sm:$0xff]
  %v331 = vld [vmem:[%s4 + $0x2a8] sm:$0xff]
  %v332 = vld [vmem:[%s4 + $0x2b0] sm:$0xff]
  %v333 = vld [vmem:[%s4 + $0x2b8] sm:$0xff]
  %v334 = vld [vmem:[%s4 + $0x2c0] sm:$0xff]
  %v335 = vld [vmem:[%s4 + $0x2c8] sm:$0xff]
  %v336 = vld [vmem:[%s4 + $0x2d0] sm:$0xff]
  %v337 = vld [vmem:[%s4 + $0x2d8] sm:$0xff]
  %v338 = vld [vmem:[%s4 + $0x2e0] sm:$0xff]
  %v339 = vld [vmem:[%s4 + $0x2e8] sm:$0xff]
  %v340 = vld [vmem:[%s4 + $0x2f0] sm:$0xff]
  %v341 = vld [vmem:[%s4 + $0x2f8] sm:$0xff]
  %v342 = vld [vmem:[%s4 + $0x300] sm:$0xff]
  %v343 = vld [vmem:[%s4 + $0x308] sm:$0xff]
  %v344 = vld [vmem:[%s4 + $0x310] sm:$0xff]
  %v345 = vld [vmem:[%s4 + $0x318] sm:$0xff]
  %v346 = vld [vmem:[%s4 + $0x320] sm:$0xff]
  %v347 = vld [vmem:[%s4 + $0x328] sm:$0xff]
  %v348 = vld [vmem:[%s4 + $0x330] sm:$0xff]
  %v349 = vld [vmem:[%s4 + $0x338] sm:$0xff]
  %v350 = vld [vmem:[%s4 + $0x340] sm:$0xff]
  %v351 = vld [vmem:[%s4 + $0x348] sm:$0xff]
  %v352 = vld [vmem:[%s4 + $0x350] sm:$0xff]
  %v353 = vld [vmem:[%s4 + $0x358] sm:$0xff]
  %v354 = vld [vmem:[%s4 + $0x360] sm:$0xff]
  %v355 = vld [vmem:[%s4 + $0x368] sm:$0xff]
  %v356 = vld [vmem:[%s4 + $0x370] sm:$0xff]
  %v357 = vld [vmem:[%s4 + $0x378] sm:$0xff]
  %v358 = vld [vmem:[%s4 + $0x380] sm:$0xff]
  %v359 = vld [vmem:[%s4 + $0x388] sm:$0xff]
  %v360 = vld [vmem:[%s4 + $0x390] sm:$0xff]
  %v361 = vld [vmem:[%s4 + $0x398] sm:$0xff]
  %v362 = vld [vmem:[%s4 + $0x3a0] sm:$0xff]
  %v363 = vld [vmem:[%s4 + $0x3a8] sm:$0xff]
  %v364 = vld [vmem:[%s4 + $0x3b0] sm:$0xff]
  %v365 = vld [vmem:[%s4 + $0x3b8] sm:$0xff]
  %v366 = vld [vmem:[%s4 + $0x3c0] sm:$0xff]
  %v367 = vld [vmem:[%s4 + $0x3c8] sm:$0xff]
  %v368 = vld [vmem:[%s4 + $0x3d0] sm:$0xff]
  %v369 = vld [vmem:[%s4 + $0x3d8] sm:$0xff]
  %v370 = vld [vmem:[%s4 + $0x3e0] sm:$0xff]
  %v371 = vld [vmem:[%s4 + $0x3e8] sm:$0xff]
  %v372 = vld [vmem:[%s4 + $0x3f0] sm:$0xff]
  %v373 = vld [vmem:[%s4 + $0x3f8] sm:$0xff]
  %v374 = vld [vmem:[%s5] sm:$0xf]
  %v376 = vperm.slane %v374, 0
  %v377 = vperm.slane %v374, 1
  %v378 = vperm.slane %v374, 2
  %v379 = vperm.slane %v374, 3
  %v512 = vunpack.c.l.b16 %v246
  %v513 = vunpack.c.h.b16 %v246
  %v514 = vunpack.c.l.b16 %v247
  %v515 = vunpack.c.h.b16 %v247
  %v516 = vunpack.c.l.b16 %v248
  %v517 = vunpack.c.h.b16 %v248
  %v518 = vunpack.c.l.b16 %v249
  %v519 = vunpack.c.h.b16 %v249
  %v520 = vunpack.c.l.b16 %v250
  %v521 = vunpack.c.h.b16 %v250
  %v522 = vunpack.c.l.b16 %v251
  %v523 = vunpack.c.h.b16 %v251
  %v524 = vunpack.c.l.b16 %v252
  %v525 = vunpack.c.h.b16 %v252
  %v526 = vunpack.c.l.b16 %v253
  %v527 = vunpack.c.h.b16 %v253
  %v528 = vunpack.c.l.b16 %v254
  %v529 = vunpack.c.h.b16 %v254
  %v530 = vunpack.c.l.b16 %v255
  %v531 = vunpack.c.h.b16 %v255
  %v532 = vunpack.c.l.b16 %v256
  %v533 = vunpack.c.h.b16 %v256
  %v534 = vunpack.c.l.b16 %v257
  %v535 = vunpack.c.h.b16 %v257
  %v536 = vunpack.c.l.b16 %v258
  %v537 = vunpack.c.h.b16 %v258
  %v538 = vunpack.c.l.b16 %v259
  %v539 = vunpack.c.h.b16 %v259
  %v540 = vunpack.c.l.b16 %v260
  %v541 = vunpack.c.h.b16 %v260
  %v542 = vunpack.c.l.b16 %v261
  %v543 = vunpack.c.h.b16 %v261
  %v544 = vunpack.c.l.b16 %v262
  %v545 = vunpack.c.h.b16 %v262
  %v546 = vunpack.c.l.b16 %v263
  %v547 = vunpack.c.h.b16 %v263
  %v548 = vunpack.c.l.b16 %v264
  %v549 = vunpack.c.h.b16 %v264
  %v550 = vunpack.c.l.b16 %v265
  %v551 = vunpack.c.h.b16 %v265
  %v552 = vunpack.c.l.b16 %v266
  %v553 = vunpack.c.h.b16 %v266
  %v554 = vunpack.c.l.b16 %v267
  %v555 = vunpack.c.h.b16 %v267
  %v556 = vunpack.c.l.b16 %v268
  %v557 = vunpack.c.h.b16 %v268
  %v558 = vunpack.c.l.b16 %v269
  %v559 = vunpack.c.h.b16 %v269
  %v560 = vunpack.c.l.b16 %v270
  %v561 = vunpack.c.h.b16 %v270
  %v562 = vunpack.c.l.b16 %v271
  %v563 = vunpack.c.h.b16 %v271
  %v564 = vunpack.c.l.b16 %v272
  %v565 = vunpack.c.h.b16 %v272
  %v566 = vunpack.c.l.b16 %v273
  %v567 = vunpack.c.h.b16 %v273
  %v568 = vunpack.c.l.b16 %v274
  %v569 = vunpack.c.h.b16 %v274
  %v570 = vunpack.c.l.b16 %v275
  %v571 = vunpack.c.h.b16 %v275
  %v572 = vunpack.c.l.b16 %v276
  %v573 = vunpack.c.h.b16 %v276
  %v574 = vunpack.c.l.b16 %v277
  %v575 = vunpack.c.h.b16 %v277
  %v576 = vunpack.c.l.b16 %v278
  %v577 = vunpack.c.h.b16 %v278
  %v578 = vunpack.c.l.b16 %v279
  %v579 = vunpack.c.h.b16 %v279
  %v580 = vunpack.c.l.b16 %v280
  %v581 = vunpack.c.h.b16 %v280
  %v582 = vunpack.c.l.b16 %v281
  %v583 = vunpack.c.h.b16 %v281
  %v584 = vunpack.c.l.b16 %v282
  %v585 = vunpack.c.h.b16 %v282
  %v586 = vunpack.c.l.b16 %v283
  %v587 = vunpack.c.h.b16 %v283
  %v588 = vunpack.c.l.b16 %v284
  %v589 = vunpack.c.h.b16 %v284
  %v590 = vunpack.c.l.b16 %v285
  %v591 = vunpack.c.h.b16 %v285
  %v592 = vunpack.c.l.b16 %v286
  %v593 = vunpack.c.h.b16 %v286
  %v594 = vunpack.c.l.b16 %v287
  %v595 = vunpack.c.h.b16 %v287
  %v596 = vunpack.c.l.b16 %v288
  %v597 = vunpack.c.h.b16 %v288
  %v598 = vunpack.c.l.b16 %v289
  %v599 = vunpack.c.h.b16 %v289
  %v600 = vunpack.c.l.b16 %v290
  %v601 = vunpack.c.h.b16 %v290
  %v602 = vunpack.c.l.b16 %v291
  %v603 = vunpack.c.h.b16 %v291
  %v604 = vunpack.c.l.b16 %v292
  %v605 = vunpack.c.h.b16 %v292
  %v606 = vunpack.c.l.b16 %v293
  %v607 = vunpack.c.h.b16 %v293
  %v608 = vunpack.c.l.b16 %v294
  %v609 = vunpack.c.h.b16 %v294
  %v610 = vunpack.c.l.b16 %v295
  %v611 = vunpack.c.h.b16 %v295
  %v612 = vunpack.c.l.b16 %v296
  %v613 = vunpack.c.h.b16 %v296
  %v614 = vunpack.c.l.b16 %v297
  %v615 = vunpack.c.h.b16 %v297
  %v616 = vunpack.c.l.b16 %v298
  %v617 = vunpack.c.h.b16 %v298
  %v618 = vunpack.c.l.b16 %v299
  %v619 = vunpack.c.h.b16 %v299
  %v620 = vunpack.c.l.b16 %v300
  %v621 = vunpack.c.h.b16 %v300
  %v622 = vunpack.c.l.b16 %v301
  %v623 = vunpack.c.h.b16 %v301
  %v624 = vunpack.c.l.b16 %v302
  %v625 = vunpack.c.h.b16 %v302
  %v626 = vunpack.c.l.b16 %v303
  %v627 = vunpack.c.h.b16 %v303
  %v628 = vunpack.c.l.b16 %v304
  %v629 = vunpack.c.h.b16 %v304
  %v630 = vunpack.c.l.b16 %v305
  %v631 = vunpack.c.h.b16 %v305
  %v632 = vunpack.c.l.b16 %v306
  %v633 = vunpack.c.h.b16 %v306
  %v634 = vunpack.c.l.b16 %v307
  %v635 = vunpack.c.h.b16 %v307
  %v636 = vunpack.c.l.b16 %v308
  %v637 = vunpack.c.h.b16 %v308
  %v638 = vunpack.c.l.b16 %v309
  %v639 = vunpack.c.h.b16 %v309
  %v640 = vunpack.c.l.b16 %v310
  %v641 = vunpack.c.h.b16 %v310
  %v642 = vunpack.c.l.b16 %v311
  %v643 = vunpack.c.h.b16 %v311
  %v644 = vunpack.c.l.b16 %v312
  %v645 = vunpack.c.h.b16 %v312
  %v646 = vunpack.c.l.b16 %v313
  %v647 = vunpack.c.h.b16 %v313
  %v648 = vunpack.c.l.b16 %v314
  %v649 = vunpack.c.h.b16 %v314
  %v650 = vunpack.c.l.b16 %v315
  %v651 = vunpack.c.h.b16 %v315
  %v652 = vunpack.c.l.b16 %v316
  %v653 = vunpack.c.h.b16 %v316
  %v654 = vunpack.c.l.b16 %v317
  %v655 = vunpack.c.h.b16 %v317
  %v656 = vunpack.c.l.b16 %v318
  %v657 = vunpack.c.h.b16 %v318
  %v658 = vunpack.c.l.b16 %v319
  %v659 = vunpack.c.h.b16 %v319
  %v660 = vunpack.c.l.b16 %v320
  %v661 = vunpack.c.h.b16 %v320
  %v662 = vunpack.c.l.b16 %v321
  %v663 = vunpack.c.h.b16 %v321
  %v664 = vunpack.c.l.b16 %v322
  %v665 = vunpack.c.h.b16 %v322
  %v666 = vunpack.c.l.b16 %v323
  %v667 = vunpack.c.h.b16 %v323
  %v668 = vunpack.c.l.b16 %v324
  %v669 = vunpack.c.h.b16 %v324
  %v670 = vunpack.c.l.b16 %v325
  %v671 = vunpack.c.h.b16 %v325
  %v672 = vunpack.c.l.b16 %v326
  %v673 = vunpack.c.h.b16 %v326
  %v674 = vunpack.c.l.b16 %v327
  %v675 = vunpack.c.h.b16 %v327
  %v676 = vunpack.c.l.b16 %v328
  %v677 = vunpack.c.h.b16 %v328
  %v678 = vunpack.c.l.b16 %v329
  %v679 = vunpack.c.h.b16 %v329
  %v680 = vunpack.c.l.b16 %v330
  %v681 = vunpack.c.h.b16 %v330
  %v682 = vunpack.c.l.b16 %v331
  %v683 = vunpack.c.h.b16 %v331
  %v684 = vunpack.c.l.b16 %v332
  %v685 = vunpack.c.h.b16 %v332
  %v686 = vunpack.c.l.b16 %v333
  %v687 = vunpack.c.h.b16 %v333
  %v688 = vunpack.c.l.b16 %v334
  %v689 = vunpack.c.h.b16 %v334
  %v690 = vunpack.c.l.b16 %v335
  %v691 = vunpack.c.h.b16 %v335
  %v692 = vunpack.c.l.b16 %v336
  %v693 = vunpack.c.h.b16 %v336
  %v694 = vunpack.c.l.b16 %v337
  %v695 = vunpack.c.h.b16 %v337
  %v696 = vunpack.c.l.b16 %v338
  %v697 = vunpack.c.h.b16 %v338
  %v698 = vunpack.c.l.b16 %v339
  %v699 = vunpack.c.h.b16 %v339
  %v700 = vunpack.c.l.b16 %v340
  %v701 = vunpack.c.h.b16 %v340
  %v702 = vunpack.c.l.b16 %v341
  %v703 = vunpack.c.h.b16 %v341
  %v704 = vunpack.c.l.b16 %v342
  %v705 = vunpack.c.h.b16 %v342
  %v706 = vunpack.c.l.b16 %v343
  %v707 = vunpack.c.h.b16 %v343
  %v708 = vunpack.c.l.b16 %v344
  %v709 = vunpack.c.h.b16 %v344
  %v710 = vunpack.c.l.b16 %v345
  %v711 = vunpack.c.h.b16 %v345
  %v712 = vunpack.c.l.b16 %v346
  %v713 = vunpack.c.h.b16 %v346
  %v714 = vunpack.c.l.b16 %v347
  %v715 = vunpack.c.h.b16 %v347
  %v716 = vunpack.c.l.b16 %v348
  %v717 = vunpack.c.h.b16 %v348
  %v718 = vunpack.c.l.b16 %v349
  %v719 = vunpack.c.h.b16 %v349
  %v720 = vunpack.c.l.b16 %v350
  %v721 = vunpack.c.h.b16 %v350
  %v722 = vunpack.c.l.b16 %v351
  %v723 = vunpack.c.h.b16 %v351
  %v724 = vunpack.c.l.b16 %v352
  %v725 = vunpack.c.h.b16 %v352
  %v726 = vunpack.c.l.b16 %v353
  %v727 = vunpack.c.h.b16 %v353
  %v728 = vunpack.c.l.b16 %v354
  %v729 = vunpack.c.h.b16 %v354
  %v730 = vunpack.c.l.b16 %v355
  %v731 = vunpack.c.h.b16 %v355
  %v732 = vunpack.c.l.b16 %v356
  %v733 = vunpack.c.h.b16 %v356
  %v734 = vunpack.c.l.b16 %v357
  %v735 = vunpack.c.h.b16 %v357
  %v736 = vunpack.c.l.b16 %v358
  %v737 = vunpack.c.h.b16 %v358
  %v738 = vunpack.c.l.b16 %v359
  %v739 = vunpack.c.h.b16 %v359
  %v740 = vunpack.c.l.b16 %v360
  %v741 = vunpack.c.h.b16 %v360
  %v742 = vunpack.c.l.b16 %v361
  %v743 = vunpack.c.h.b16 %v361
  %v744 = vunpack.c.l.b16 %v362
  %v745 = vunpack.c.h.b16 %v362
  %v746 = vunpack.c.l.b16 %v363
  %v747 = vunpack.c.h.b16 %v363
  %v748 = vunpack.c.l.b16 %v364
  %v749 = vunpack.c.h.b16 %v364
  %v750 = vunpack.c.l.b16 %v365
  %v751 = vunpack.c.h.b16 %v365
  %v752 = vunpack.c.l.b16 %v366
  %v753 = vunpack.c.h.b16 %v366
  %v754 = vunpack.c.l.b16 %v367
  %v755 = vunpack.c.h.b16 %v367
  %v756 = vunpack.c.l.b16 %v368
  %v757 = vunpack.c.h.b16 %v368
  %v758 = vunpack.c.l.b16 %v369
  %v759 = vunpack.c.h.b16 %v369
  %v760 = vunpack.c.l.b16 %v370
  %v761 = vunpack.c.h.b16 %v370
  %v762 = vunpack.c.l.b16 %v371
  %v763 = vunpack.c.h.b16 %v371
  %v764 = vunpack.c.l.b16 %v372
  %v765 = vunpack.c.h.b16 %v372
  %v766 = vunpack.c.l.b16 %v373
  %v767 = vunpack.c.h.b16 %v373
  %v768 = vpack.c.b16 %v516, %v512
  %v769 = vpack.c.b16 %v517, %v513
  %v770 = vpack.c.b16 %v518, %v514
  %v771 = vpack.c.b16 %v519, %v515
  %v772 = vpack.c.b16 %v524, %v520
  %v773 = vpack.c.b16 %v525, %v521
  %v774 = vpack.c.b16 %v526, %v522
  %v775 = vpack.c.b16 %v527, %v523
  %v776 = vpack.c.b16 %v532, %v528
  %v777 = vpack.c.b16 %v533, %v529
  %v778 = vpack.c.b16 %v534, %v530
  %v779 = vpack.c.b16 %v535, %v531
  %v780 = vpack.c.b16 %v540, %v536
  %v781 = vpack.c.b16 %v541, %v537
  %v782 = vpack.c.b16 %v542, %v538
  %v783 = vpack.c.b16 %v543, %v539
  %v784 = vpack.c.b16 %v548, %v544
  %v785 = vpack.c.b16 %v549, %v545
  %v786 = vpack.c.b16 %v550, %v546
  %v787 = vpack.c.b16 %v551, %v547
  %v788 = vpack.c.b16 %v556, %v552
  %v789 = vpack.c.b16 %v557, %v553
  %v790 = vpack.c.b16 %v558, %v554
  %v791 = vpack.c.b16 %v559, %v555
  %v792 = vpack.c.b16 %v564, %v560
  %v793 = vpack.c.b16 %v565, %v561
  %v794 = vpack.c.b16 %v566, %v562
  %v795 = vpack.c.b16 %v567, %v563
  %v796 = vpack.c.b16 %v572, %v568
  %v797 = vpack.c.b16 %v573, %v569
  %v798 = vpack.c.b16 %v574, %v570
  %v799 = vpack.c.b16 %v575, %v571
  %v800 = vpack.c.b16 %v580, %v576
  %v801 = vpack.c.b16 %v581, %v577
  %v802 = vpack.c.b16 %v582, %v578
  %v803 = vpack.c.b16 %v583, %v579
  %v804 = vpack.c.b16 %v588, %v584
  %v805 = vpack.c.b16 %v589, %v585
  %v806 = vpack.c.b16 %v590, %v586
  %v807 = vpack.c.b16 %v591, %v587
  %v808 = vpack.c.b16 %v596, %v592
  %v809 = vpack.c.b16 %v597, %v593
  %v810 = vpack.c.b16 %v598, %v594
  %v811 = vpack.c.b16 %v599, %v595
  %v812 = vpack.c.b16 %v604, %v600
  %v813 = vpack.c.b16 %v605, %v601
  %v814 = vpack.c.b16 %v606, %v602
  %v815 = vpack.c.b16 %v607, %v603
  %v816 = vpack.c.b16 %v612, %v608
  %v817 = vpack.c.b16 %v613, %v609
  %v818 = vpack.c.b16 %v614, %v610
  %v819 = vpack.c.b16 %v615, %v611
  %v820 = vpack.c.b16 %v620, %v616
  %v821 = vpack.c.b16 %v621, %v617
  %v822 = vpack.c.b16 %v622, %v618
  %v823 = vpack.c.b16 %v623, %v619
  %v824 = vpack.c.b16 %v628, %v624
  %v825 = vpack.c.b16 %v629, %v625
  %v826 = vpack.c.b16 %v630, %v626
  %v827 = vpack.c.b16 %v631, %v627
  %v828 = vpack.c.b16 %v636, %v632
  %v829 = vpack.c.b16 %v637, %v633
  %v830 = vpack.c.b16 %v638, %v634
  %v831 = vpack.c.b16 %v639, %v635
  %v832 = vpack.c.b16 %v644, %v640
  %v833 = vpack.c.b16 %v645, %v641
  %v834 = vpack.c.b16 %v646, %v642
  %v835 = vpack.c.b16 %v647, %v643
  %v836 = vpack.c.b16 %v652, %v648
  %v837 = vpack.c.b16 %v653, %v649
  %v838 = vpack.c.b16 %v654, %v650
  %v839 = vpack.c.b16 %v655, %v651
  %v840 = vpack.c.b16 %v660, %v656
  %v841 = vpack.c.b16 %v661, %v657
  %v842 = vpack.c.b16 %v662, %v658
  %v843 = vpack.c.b16 %v663, %v659
  %v844 = vpack.c.b16 %v668, %v664
  %v845 = vpack.c.b16 %v669, %v665
  %v846 = vpack.c.b16 %v670, %v666
  %v847 = vpack.c.b16 %v671, %v667
  %v848 = vpack.c.b16 %v676, %v672
  %v849 = vpack.c.b16 %v677, %v673
  %v850 = vpack.c.b16 %v678, %v674
  %v851 = vpack.c.b16 %v679, %v675
  %v852 = vpack.c.b16 %v684, %v680
  %v853 = vpack.c.b16 %v685, %v681
  %v854 = vpack.c.b16 %v686, %v682
  %v855 = vpack.c.b16 %v687, %v683
  %v856 = vpack.c.b16 %v692, %v688
  %v857 = vpack.c.b16 %v693, %v689
  %v858 = vpack.c.b16 %v694, %v690
  %v859 = vpack.c.b16 %v695, %v691
  %v860 = vpack.c.b16 %v700, %v696
  %v861 = vpack.c.b16 %v701, %v697
  %v862 = vpack.c.b16 %v702, %v698
  %v863 = vpack.c.b16 %v703, %v699
  %v864 = vpack.c.b16 %v708, %v704
  %v865 = vpack.c.b16 %v709, %v705
  %v866 = vpack.c.b16 %v710, %v706
  %v867 = vpack.c.b16 %v711, %v707
  %v868 = vpack.c.b16 %v716, %v712
  %v869 = vpack.c.b16 %v717, %v713
  %v870 = vpack.c.b16 %v718, %v714
  %v871 = vpack.c.b16 %v719, %v715
  %v872 = vpack.c.b16 %v724, %v720
  %v873 = vpack.c.b16 %v725, %v721
  %v874 = vpack.c.b16 %v726, %v722
  %v875 = vpack.c.b16 %v727, %v723
  %v876 = vpack.c.b16 %v732, %v728
  %v877 = vpack.c.b16 %v733, %v729
  %v878 = vpack.c.b16 %v734, %v730
  %v879 = vpack.c.b16 %v735, %v731
  %v880 = vpack.c.b16 %v740, %v736
  %v881 = vpack.c.b16 %v741, %v737
  %v882 = vpack.c.b16 %v742, %v738
  %v883 = vpack.c.b16 %v743, %v739
  %v884 = vpack.c.b16 %v748, %v744
  %v885 = vpack.c.b16 %v749, %v745
  %v886 = vpack.c.b16 %v750, %v746
  %v887 = vpack.c.b16 %v751, %v747
  %v888 = vpack.c.b16 %v756, %v752
  %v889 = vpack.c.b16 %v757, %v753
  %v890 = vpack.c.b16 %v758, %v754
  %v891 = vpack.c.b16 %v759, %v755
  %v892 = vpack.c.b16 %v764, %v760
  %v893 = vpack.c.b16 %v765, %v761
  %v894 = vpack.c.b16 %v766, %v762
  %v895 = vpack.c.b16 %v767, %v763
  %1024 = vmatpush.bf16.msra.mxu0 %v796
  %1025 = vmatpush.bf16.msra.mxu0 %v792
  %1026 = vmatpush.bf16.msra.mxu0 %v788
  %1027 = vmatpush.bf16.msra.mxu0 %v784
  %1028 = vmatpush.bf16.msra.mxu0 %v780
  %1029 = vmatpush.bf16.msra.mxu0 %v776
  %1030 = vmatpush.bf16.msra.mxu0 %v772
  %1031 = vmatpush.bf16.msra.mxu0 %v768
  %1032 = vmatmul.bf16.gmra.mxu0 %v242
  %v1033 = vpop.f32.mrf.mxu0
  %v1034 = vadd.f32 %v376, %v1033
  %v1035 = vpop.f32.mrf.mxu0
  %1036 = vdwg.mxu0
  %1037 = vmatpush.bf16.msra.mxu0 %v828
  %1038 = vmatpush.bf16.msra.mxu0 %v824
  %1039 = vmatpush.bf16.msra.mxu0 %v820
  %1040 = vmatpush.bf16.msra.mxu0 %v816
  %1041 = vmatpush.bf16.msra.mxu0 %v812
  %1042 = vmatpush.bf16.msra.mxu0 %v808
  %1043 = vmatpush.bf16.msra.mxu0 %v804
  %1044 = vmatpush.bf16.msra.mxu0 %v800
  %1045 = vmatmul.bf16.gmra.mxu0 %v243
  %v1046 = vpop.f32.mrf.mxu0
  %v1047 = vadd.f32 %v1034, %v1046
  %v1048 = vpop.f32.mrf.mxu0
  %1049 = vdwg.mxu0
  %1050 = vmatpush.bf16.msra.mxu0 %v860
  %1051 = vmatpush.bf16.msra.mxu0 %v856
  %1052 = vmatpush.bf16.msra.mxu0 %v852
  %1053 = vmatpush.bf16.msra.mxu0 %v848
  %1054 = vmatpush.bf16.msra.mxu0 %v844
  %1055 = vmatpush.bf16.msra.mxu0 %v840
  %1056 = vmatpush.bf16.msra.mxu0 %v836
  %1057 = vmatpush.bf16.msra.mxu0 %v832
  %1058 = vmatmul.bf16.gmra.mxu0 %v244
  %v1059 = vpop.f32.mrf.mxu0
  %v1060 = vadd.f32 %v1047, %v1059
  %v1061 = vpop.f32.mrf.mxu0
  %1062 = vdwg.mxu0
  %1063 = vmatpush.bf16.msra.mxu0 %v892
  %1064 = vmatpush.bf16.msra.mxu0 %v888
  %1065 = vmatpush.bf16.msra.mxu0 %v884
  %1066 = vmatpush.bf16.msra.mxu0 %v880
  %1067 = vmatpush.bf16.msra.mxu0 %v876
  %1068 = vmatpush.bf16.msra.mxu0 %v872
  %1069 = vmatpush.bf16.msra.mxu0 %v868
  %1070 = vmatpush.bf16.msra.mxu0 %v864
  %1071 = vmatmul.bf16.gmra.mxu0 %v245
  %v1072 = vpop.f32.mrf.mxu0
  %v1073 = vadd.f32 %v1060, %v1072
  %v1074 = vpop.f32.mrf.mxu0
  %1075 = vdwg.mxu0
  %1076 = vmatpush.bf16.msra.mxu0 %v797
  %1077 = vmatpush.bf16.msra.mxu0 %v793
  %1078 = vmatpush.bf16.msra.mxu0 %v789
  %1079 = vmatpush.bf16.msra.mxu0 %v785
  %1080 = vmatpush.bf16.msra.mxu0 %v781
  %1081 = vmatpush.bf16.msra.mxu0 %v777
  %1082 = vmatpush.bf16.msra.mxu0 %v773
  %1083 = vmatpush.bf16.msra.mxu0 %v769
  %1084 = vmatmul.bf16.gmra.mxu0 %v242
  %v1085 = vpop.f32.mrf.mxu0
  %v1086 = vadd.f32 %v377, %v1085
  %v1087 = vpop.f32.mrf.mxu0
  %1088 = vdwg.mxu0
  %1089 = vmatpush.bf16.msra.mxu0 %v829
  %1090 = vmatpush.bf16.msra.mxu0 %v825
  %1091 = vmatpush.bf16.msra.mxu0 %v821
  %1092 = vmatpush.bf16.msra.mxu0 %v817
  %1093 = vmatpush.bf16.msra.mxu0 %v813
  %1094 = vmatpush.bf16.msra.mxu0 %v809
  %1095 = vmatpush.bf16.msra.mxu0 %v805
  %1096 = vmatpush.bf16.msra.mxu0 %v801
  %1097 = vmatmul.bf16.gmra.mxu0 %v243
  %v1098 = vpop.f32.mrf.mxu0
  %v1099 = vadd.f32 %v1086, %v1098
  %v1100 = vpop.f32.mrf.mxu0
  %1101 = vdwg.mxu0
  %1102 = vmatpush.bf16.msra.mxu0 %v861
  %1103 = vmatpush.bf16.msra.mxu0 %v857
  %1104 = vmatpush.bf16.msra.mxu0 %v853
  %1105 = vmatpush.bf16.msra.mxu0 %v849
  %1106 = vmatpush.bf16.msra.mxu0 %v845
  %1107 = vmatpush.bf16.msra.mxu0 %v841
  %1108 = vmatpush.bf16.msra.mxu0 %v837
  %1109 = vmatpush.bf16.msra.mxu0 %v833
  %1110 = vmatmul.bf16.gmra.mxu0 %v244
  %v1111 = vpop.f32.mrf.mxu0
  %v1112 = vadd.f32 %v1099, %v1111
  %v1113 = vpop.f32.mrf.mxu0
  %1114 = vdwg.mxu0
  %1115 = vmatpush.bf16.msra.mxu0 %v893
  %1116 = vmatpush.bf16.msra.mxu0 %v889
  %1117 = vmatpush.bf16.msra.mxu0 %v885
  %1118 = vmatpush.bf16.msra.mxu0 %v881
  %1119 = vmatpush.bf16.msra.mxu0 %v877
  %1120 = vmatpush.bf16.msra.mxu0 %v873
  %1121 = vmatpush.bf16.msra.mxu0 %v869
  %1122 = vmatpush.bf16.msra.mxu0 %v865
  %1123 = vmatmul.bf16.gmra.mxu0 %v245
  %v1124 = vpop.f32.mrf.mxu0
  %v1125 = vadd.f32 %v1112, %v1124
  %v1126 = vpop.f32.mrf.mxu0
  %1127 = vdwg.mxu0
  %1128 = vmatpush.bf16.msra.mxu0 %v798
  %1129 = vmatpush.bf16.msra.mxu0 %v794
  %1130 = vmatpush.bf16.msra.mxu0 %v790
  %1131 = vmatpush.bf16.msra.mxu0 %v786
  %1132 = vmatpush.bf16.msra.mxu0 %v782
  %1133 = vmatpush.bf16.msra.mxu0 %v778
  %1134 = vmatpush.bf16.msra.mxu0 %v774
  %1135 = vmatpush.bf16.msra.mxu0 %v770
  %1136 = vmatmul.bf16.gmra.mxu0 %v242
  %v1137 = vpop.f32.mrf.mxu0
  %v1138 = vadd.f32 %v378, %v1137
  %v1139 = vpop.f32.mrf.mxu0
  %1140 = vdwg.mxu0
  %1141 = vmatpush.bf16.msra.mxu0 %v830
  %1142 = vmatpush.bf16.msra.mxu0 %v826
  %1143 = vmatpush.bf16.msra.mxu0 %v822
  %1144 = vmatpush.bf16.msra.mxu0 %v818
  %1145 = vmatpush.bf16.msra.mxu0 %v814
  %1146 = vmatpush.bf16.msra.mxu0 %v810
  %1147 = vmatpush.bf16.msra.mxu0 %v806
  %1148 = vmatpush.bf16.msra.mxu0 %v802
  %1149 = vmatmul.bf16.gmra.mxu0 %v243
  %v1150 = vpop.f32.mrf.mxu0
  %v1151 = vadd.f32 %v1138, %v1150
  %v1152 = vpop.f32.mrf.mxu0
  %1153 = vdwg.mxu0
  %1154 = vmatpush.bf16.msra.mxu0 %v862
  %1155 = vmatpush.bf16.msra.mxu0 %v858
  %1156 = vmatpush.bf16.msra.mxu0 %v854
  %1157 = vmatpush.bf16.msra.mxu0 %v850
  %1158 = vmatpush.bf16.msra.mxu0 %v846
  %1159 = vmatpush.bf16.msra.mxu0 %v842
  %1160 = vmatpush.bf16.msra.mxu0 %v838
  %1161 = vmatpush.bf16.msra.mxu0 %v834
  %1162 = vmatmul.bf16.gmra.mxu0 %v244
  %v1163 = vpop.f32.mrf.mxu0
  %v1164 = vadd.f32 %v1151, %v1163
  %v1165 = vpop.f32.mrf.mxu0
  %1166 = vdwg.mxu0
  %1167 = vmatpush.bf16.msra.mxu0 %v894
  %1168 = vmatpush.bf16.msra.mxu0 %v890
  %1169 = vmatpush.bf16.msra.mxu0 %v886
  %1170 = vmatpush.bf16.msra.mxu0 %v882
  %1171 = vmatpush.bf16.msra.mxu0 %v878
  %1172 = vmatpush.bf16.msra.mxu0 %v874
  %1173 = vmatpush.bf16.msra.mxu0 %v870
  %1174 = vmatpush.bf16.msra.mxu0 %v866
  %1175 = vmatmul.bf16.gmra.mxu0 %v245
  %v1176 = vpop.f32.mrf.mxu0
  %v1177 = vadd.f32 %v1164, %v1176
  %v1178 = vpop.f32.mrf.mxu0
  %1179 = vdwg.mxu0
  %1180 = vmatpush.bf16.msra.mxu0 %v799
  %1181 = vmatpush.bf16.msra.mxu0 %v795
  %1182 = vmatpush.bf16.msra.mxu0 %v791
  %1183 = vmatpush.bf16.msra.mxu0 %v787
  %1184 = vmatpush.bf16.msra.mxu0 %v783
  %1185 = vmatpush.bf16.msra.mxu0 %v779
  %1186 = vmatpush.bf16.msra.mxu0 %v775
  %1187 = vmatpush.bf16.msra.mxu0 %v771
  %1188 = vmatmul.bf16.gmra.mxu0 %v242
  %v1189 = vpop.f32.mrf.mxu0
  %v1190 = vadd.f32 %v379, %v1189
  %v1191 = vpop.f32.mrf.mxu0
  %1192 = vdwg.mxu0
  %1193 = vmatpush.bf16.msra.mxu0 %v831
  %1194 = vmatpush.bf16.msra.mxu0 %v827
  %1195 = vmatpush.bf16.msra.mxu0 %v823
  %1196 = vmatpush.bf16.msra.mxu0 %v819
  %1197 = vmatpush.bf16.msra.mxu0 %v815
  %1198 = vmatpush.bf16.msra.mxu0 %v811
  %1199 = vmatpush.bf16.msra.mxu0 %v807
  %1200 = vmatpush.bf16.msra.mxu0 %v803
  %1201 = vmatmul.bf16.gmra.mxu0 %v243
  %v1202 = vpop.f32.mrf.mxu0
  %v1203 = vadd.f32 %v1190, %v1202
  %v1204 = vpop.f32.mrf.mxu0
  %1205 = vdwg.mxu0
  %1206 = vmatpush.bf16.msra.mxu0 %v863
  %1207 = vmatpush.bf16.msra.mxu0 %v859
  %1208 = vmatpush.bf16.msra.mxu0 %v855
  %1209 = vmatpush.bf16.msra.mxu0 %v851
  %1210 = vmatpush.bf16.msra.mxu0 %v847
  %1211 = vmatpush.bf16.msra.mxu0 %v843
  %1212 = vmatpush.bf16.msra.mxu0 %v839
  %1213 = vmatpush.bf16.msra.mxu0 %v835
  %1214 = vmatmul.bf16.gmra.mxu0 %v244
  %v1215 = vpop.f32.mrf.mxu0
  %v1216 = vadd.f32 %v1203, %v1215
  %v1217 = vpop.f32.mrf.mxu0
  %1218 = vdwg.mxu0
  %1219 = vmatpush.bf16.msra.mxu0 %v895
  %1220 = vmatpush.bf16.msra.mxu0 %v891
  %1221 = vmatpush.bf16.msra.mxu0 %v887
  %1222 = vmatpush.bf16.msra.mxu0 %v883
  %1223 = vmatpush.bf16.msra.mxu0 %v879
  %1224 = vmatpush.bf16.msra.mxu0 %v875
  %1225 = vmatpush.bf16.msra.mxu0 %v871
  %1226 = vmatpush.bf16.msra.mxu0 %v867
  %1227 = vmatmul.bf16.gmra.mxu0 %v245
  %v1228 = vpop.f32.mrf.mxu0
  %v1229 = vadd.f32 %v1216, %v1228
  %v1230 = vpop.f32.mrf.mxu0
  %1231 = vdwg.mxu0
  %vm1232 = vcmp.gt.f32.partialorder %v1073, 0.0
  %vm1233 = vcmp.gt.f32.partialorder %v1125, 0.0
  %vm1234 = vcmp.gt.f32.partialorder %v1177, 0.0
  %vm1235 = vcmp.gt.f32.partialorder %v1229, 0.0
  %v1236 = vmul.f32 %v1073, 0.01
  %v1237 = vmul.f32 %v1125, 0.01
  %v1238 = vmul.f32 %v1177, 0.01
  %v1239 = vmul.f32 %v1229, 0.01
  %v1240 = vsel %vm1232, %v1073, %v1236
  %v1241 = vsel %vm1233, %v1125, %v1237
  %v1242 = vsel %vm1234, %v1177, %v1238
  %v1243 = vsel %vm1235, %v1229, %v1239
  %s1244 = sadd.s32 %s36, 1209535159
  %v1245 = vstv %s1244
  %v1246 = vadd.s32 %v45, %v1245
  %v1247 = vadd.s32 %v52, %v1245
  %v1248 = vadd.s32 %v53, %v1245
  %v1249 = vadd.s32 %v54, %v1245
  %v1250 = vshrl.u32 %v1246, 16
  %v1251 = vshrl.u32 %v1247, 16
  %v1252 = vshrl.u32 %v1248, 16
  %v1253 = vshrl.u32 %v1249, 16
  %v1254 = vxor.u32 %v1246, %v1250
  %v1255 = vxor.u32 %v1247, %v1251
  %v1256 = vxor.u32 %v1248, %v1252
  %v1257 = vxor.u32 %v1249, %v1253
  %v1258 = vmul.u32 %v1254, 2146121005
  %v1259 = vmul.u32 %v1255, 2146121005
  %v1260 = vmul.u32 %v1256, 2146121005
  %v1261 = vmul.u32 %v1257, 2146121005
  %v1262 = vshrl.u32 %v1258, 15
  %v1263 = vshrl.u32 %v1259, 15
  %v1264 = vshrl.u32 %v1260, 15
  %v1265 = vshrl.u32 %v1261, 15
  %v1266 = vxor.u32 %v1258, %v1262
  %v1267 = vxor.u32 %v1259, %v1263
  %v1268 = vxor.u32 %v1260, %v1264
  %v1269 = vxor.u32 %v1261, %v1265
  %v1270 = vadd.s32 %v1266, 2147483648
  %vm1272 = vcmp.ge.s32.totalorder %v1270, 2576980378
  %v1273 = vadd.s32 %v1267, 2147483648
  %vm1275 = vcmp.ge.s32.totalorder %v1273, 2576980378
  %v1276 = vadd.s32 %v1268, 2147483648
  %vm1278 = vcmp.ge.s32.totalorder %v1276, 2576980378
  %v1279 = vadd.s32 %v1269, 2147483648
  %vm1281 = vcmp.ge.s32.totalorder %v1279, 2576980378
  %v1282 = vmul.f32 %v1240, 1.1111112
  %v1283 = vmul.f32 %v1241, 1.1111112
  %v1284 = vmul.f32 %v1242, 1.1111112
  %v1285 = vmul.f32 %v1243, 1.1111112
  %v1286 = vsel %vm1272, %v1282, 0.0
  %v1287 = vsel %vm1275, %v1283, 0.0
  %v1288 = vsel %vm1278, %v1284, 0.0
  %v1289 = vsel %vm1281, %v1285, 0.0
  %v1290 = vpack.c.bf16 %v1286, %v1286
  %v1291 = vpack.c.bf16 %v1287, %v1287
  %v1292 = vpack.c.bf16 %v1288, %v1288
  %v1293 = vpack.c.bf16 %v1289, %v1289
  %v1294 = vld [vmem:[%s6] sm:$0xff]
  %v1295 = vld [vmem:[%s6 + $0x8] sm:$0xff]
  %v1296 = vld [vmem:[%s6 + $0x10] sm:$0xff]
  %v1297 = vld [vmem:[%s6 + $0x18] sm:$0xff]
  %v1298 = vld [vmem:[%s6 + $0x20] sm:$0xff]
  %v1299 = vld [vmem:[%s6 + $0x28] sm:$0xff]
  %v1300 = vld [vmem:[%s6 + $0x30] sm:$0xff]
  %v1301 = vld [vmem:[%s6 + $0x38] sm:$0xff]
  %v1302 = vld [vmem:[%s6 + $0x40] sm:$0xff]
  %v1303 = vld [vmem:[%s6 + $0x48] sm:$0xff]
  %v1304 = vld [vmem:[%s6 + $0x50] sm:$0xff]
  %v1305 = vld [vmem:[%s6 + $0x58] sm:$0xff]
  %v1306 = vld [vmem:[%s6 + $0x60] sm:$0xff]
  %v1307 = vld [vmem:[%s6 + $0x68] sm:$0xff]
  %v1308 = vld [vmem:[%s6 + $0x70] sm:$0xff]
  %v1309 = vld [vmem:[%s6 + $0x78] sm:$0xff]
  %v1310 = vld [vmem:[%s6 + $0x80] sm:$0xff]
  %v1311 = vld [vmem:[%s6 + $0x88] sm:$0xff]
  %v1312 = vld [vmem:[%s6 + $0x90] sm:$0xff]
  %v1313 = vld [vmem:[%s6 + $0x98] sm:$0xff]
  %v1314 = vld [vmem:[%s6 + $0xa0] sm:$0xff]
  %v1315 = vld [vmem:[%s6 + $0xa8] sm:$0xff]
  %v1316 = vld [vmem:[%s6 + $0xb0] sm:$0xff]
  %v1317 = vld [vmem:[%s6 + $0xb8] sm:$0xff]
  %v1318 = vld [vmem:[%s6 + $0xc0] sm:$0xff]
  %v1319 = vld [vmem:[%s6 + $0xc8] sm:$0xff]
  %v1320 = vld [vmem:[%s6 + $0xd0] sm:$0xff]
  %v1321 = vld [vmem:[%s6 + $0xd8] sm:$0xff]
  %v1322 = vld [vmem:[%s6 + $0xe0] sm:$0xff]
  %v1323 = vld [vmem:[%s6 + $0xe8] sm:$0xff]
  %v1324 = vld [vmem:[%s6 + $0xf0] sm:$0xff]
  %v1325 = vld [vmem:[%s6 + $0xf8] sm:$0xff]
  %v1326 = vld [vmem:[%s6 + $0x100] sm:$0xff]
  %v1327 = vld [vmem:[%s6 + $0x108] sm:$0xff]
  %v1328 = vld [vmem:[%s6 + $0x110] sm:$0xff]
  %v1329 = vld [vmem:[%s6 + $0x118] sm:$0xff]
  %v1330 = vld [vmem:[%s6 + $0x120] sm:$0xff]
  %v1331 = vld [vmem:[%s6 + $0x128] sm:$0xff]
  %v1332 = vld [vmem:[%s6 + $0x130] sm:$0xff]
  %v1333 = vld [vmem:[%s6 + $0x138] sm:$0xff]
  %v1334 = vld [vmem:[%s6 + $0x140] sm:$0xff]
  %v1335 = vld [vmem:[%s6 + $0x148] sm:$0xff]
  %v1336 = vld [vmem:[%s6 + $0x150] sm:$0xff]
  %v1337 = vld [vmem:[%s6 + $0x158] sm:$0xff]
  %v1338 = vld [vmem:[%s6 + $0x160] sm:$0xff]
  %v1339 = vld [vmem:[%s6 + $0x168] sm:$0xff]
  %v1340 = vld [vmem:[%s6 + $0x170] sm:$0xff]
  %v1341 = vld [vmem:[%s6 + $0x178] sm:$0xff]
  %v1342 = vld [vmem:[%s6 + $0x180] sm:$0xff]
  %v1343 = vld [vmem:[%s6 + $0x188] sm:$0xff]
  %v1344 = vld [vmem:[%s6 + $0x190] sm:$0xff]
  %v1345 = vld [vmem:[%s6 + $0x198] sm:$0xff]
  %v1346 = vld [vmem:[%s6 + $0x1a0] sm:$0xff]
  %v1347 = vld [vmem:[%s6 + $0x1a8] sm:$0xff]
  %v1348 = vld [vmem:[%s6 + $0x1b0] sm:$0xff]
  %v1349 = vld [vmem:[%s6 + $0x1b8] sm:$0xff]
  %v1350 = vld [vmem:[%s6 + $0x1c0] sm:$0xff]
  %v1351 = vld [vmem:[%s6 + $0x1c8] sm:$0xff]
  %v1352 = vld [vmem:[%s6 + $0x1d0] sm:$0xff]
  %v1353 = vld [vmem:[%s6 + $0x1d8] sm:$0xff]
  %v1354 = vld [vmem:[%s6 + $0x1e0] sm:$0xff]
  %v1355 = vld [vmem:[%s6 + $0x1e8] sm:$0xff]
  %v1356 = vld [vmem:[%s6 + $0x1f0] sm:$0xff]
  %v1357 = vld [vmem:[%s6 + $0x1f8] sm:$0xff]
  %v1358 = vld [vmem:[%s7] sm:$0x3]
  %v1360 = vperm.slane %v1358, 0
  %v1361 = vperm.slane %v1358, 1
  %v1428 = vunpack.c.l.b16 %v1294
  %v1429 = vunpack.c.h.b16 %v1294
  %v1430 = vunpack.c.l.b16 %v1295
  %v1431 = vunpack.c.h.b16 %v1295
  %v1432 = vunpack.c.l.b16 %v1296
  %v1433 = vunpack.c.h.b16 %v1296
  %v1434 = vunpack.c.l.b16 %v1297
  %v1435 = vunpack.c.h.b16 %v1297
  %v1436 = vunpack.c.l.b16 %v1298
  %v1437 = vunpack.c.h.b16 %v1298
  %v1438 = vunpack.c.l.b16 %v1299
  %v1439 = vunpack.c.h.b16 %v1299
  %v1440 = vunpack.c.l.b16 %v1300
  %v1441 = vunpack.c.h.b16 %v1300
  %v1442 = vunpack.c.l.b16 %v1301
  %v1443 = vunpack.c.h.b16 %v1301
  %v1444 = vunpack.c.l.b16 %v1302
  %v1445 = vunpack.c.h.b16 %v1302
  %v1446 = vunpack.c.l.b16 %v1303
  %v1447 = vunpack.c.h.b16 %v1303
  %v1448 = vunpack.c.l.b16 %v1304
  %v1449 = vunpack.c.h.b16 %v1304
  %v1450 = vunpack.c.l.b16 %v1305
  %v1451 = vunpack.c.h.b16 %v1305
  %v1452 = vunpack.c.l.b16 %v1306
  %v1453 = vunpack.c.h.b16 %v1306
  %v1454 = vunpack.c.l.b16 %v1307
  %v1455 = vunpack.c.h.b16 %v1307
  %v1456 = vunpack.c.l.b16 %v1308
  %v1457 = vunpack.c.h.b16 %v1308
  %v1458 = vunpack.c.l.b16 %v1309
  %v1459 = vunpack.c.h.b16 %v1309
  %v1460 = vunpack.c.l.b16 %v1310
  %v1461 = vunpack.c.h.b16 %v1310
  %v1462 = vunpack.c.l.b16 %v1311
  %v1463 = vunpack.c.h.b16 %v1311
  %v1464 = vunpack.c.l.b16 %v1312
  %v1465 = vunpack.c.h.b16 %v1312
  %v1466 = vunpack.c.l.b16 %v1313
  %v1467 = vunpack.c.h.b16 %v1313
  %v1468 = vunpack.c.l.b16 %v1314
  %v1469 = vunpack.c.h.b16 %v1314
  %v1470 = vunpack.c.l.b16 %v1315
  %v1471 = vunpack.c.h.b16 %v1315
  %v1472 = vunpack.c.l.b16 %v1316
  %v1473 = vunpack.c.h.b16 %v1316
  %v1474 = vunpack.c.l.b16 %v1317
  %v1475 = vunpack.c.h.b16 %v1317
  %v1476 = vunpack.c.l.b16 %v1318
  %v1477 = vunpack.c.h.b16 %v1318
  %v1478 = vunpack.c.l.b16 %v1319
  %v1479 = vunpack.c.h.b16 %v1319
  %v1480 = vunpack.c.l.b16 %v1320
  %v1481 = vunpack.c.h.b16 %v1320
  %v1482 = vunpack.c.l.b16 %v1321
  %v1483 = vunpack.c.h.b16 %v1321
  %v1484 = vunpack.c.l.b16 %v1322
  %v1485 = vunpack.c.h.b16 %v1322
  %v1486 = vunpack.c.l.b16 %v1323
  %v1487 = vunpack.c.h.b16 %v1323
  %v1488 = vunpack.c.l.b16 %v1324
  %v1489 = vunpack.c.h.b16 %v1324
  %v1490 = vunpack.c.l.b16 %v1325
  %v1491 = vunpack.c.h.b16 %v1325
  %v1492 = vunpack.c.l.b16 %v1326
  %v1493 = vunpack.c.h.b16 %v1326
  %v1494 = vunpack.c.l.b16 %v1327
  %v1495 = vunpack.c.h.b16 %v1327
  %v1496 = vunpack.c.l.b16 %v1328
  %v1497 = vunpack.c.h.b16 %v1328
  %v1498 = vunpack.c.l.b16 %v1329
  %v1499 = vunpack.c.h.b16 %v1329
  %v1500 = vunpack.c.l.b16 %v1330
  %v1501 = vunpack.c.h.b16 %v1330
  %v1502 = vunpack.c.l.b16 %v1331
  %v1503 = vunpack.c.h.b16 %v1331
  %v1504 = vunpack.c.l.b16 %v1332
  %v1505 = vunpack.c.h.b16 %v1332
  %v1506 = vunpack.c.l.b16 %v1333
  %v1507 = vunpack.c.h.b16 %v1333
  %v1508 = vunpack.c.l.b16 %v1334
  %v1509 = vunpack.c.h.b16 %v1334
  %v1510 = vunpack.c.l.b16 %v1335
  %v1511 = vunpack.c.h.b16 %v1335
  %v1512 = vunpack.c.l.b16 %v1336
  %v1513 = vunpack.c.h.b16 %v1336
  %v1514 = vunpack.c.l.b16 %v1337
  %v1515 = vunpack.c.h.b16 %v1337
  %v1516 = vunpack.c.l.b16 %v1338
  %v1517 = vunpack.c.h.b16 %v1338
  %v1518 = vunpack.c.l.b16 %v1339
  %v1519 = vunpack.c.h.b16 %v1339
  %v1520 = vunpack.c.l.b16 %v1340
  %v1521 = vunpack.c.h.b16 %v1340
  %v1522 = vunpack.c.l.b16 %v1341
  %v1523 = vunpack.c.h.b16 %v1341
  %v1524 = vunpack.c.l.b16 %v1342
  %v1525 = vunpack.c.h.b16 %v1342
  %v1526 = vunpack.c.l.b16 %v1343
  %v1527 = vunpack.c.h.b16 %v1343
  %v1528 = vunpack.c.l.b16 %v1344
  %v1529 = vunpack.c.h.b16 %v1344
  %v1530 = vunpack.c.l.b16 %v1345
  %v1531 = vunpack.c.h.b16 %v1345
  %v1532 = vunpack.c.l.b16 %v1346
  %v1533 = vunpack.c.h.b16 %v1346
  %v1534 = vunpack.c.l.b16 %v1347
  %v1535 = vunpack.c.h.b16 %v1347
  %v1536 = vunpack.c.l.b16 %v1348
  %v1537 = vunpack.c.h.b16 %v1348
  %v1538 = vunpack.c.l.b16 %v1349
  %v1539 = vunpack.c.h.b16 %v1349
  %v1540 = vunpack.c.l.b16 %v1350
  %v1541 = vunpack.c.h.b16 %v1350
  %v1542 = vunpack.c.l.b16 %v1351
  %v1543 = vunpack.c.h.b16 %v1351
  %v1544 = vunpack.c.l.b16 %v1352
  %v1545 = vunpack.c.h.b16 %v1352
  %v1546 = vunpack.c.l.b16 %v1353
  %v1547 = vunpack.c.h.b16 %v1353
  %v1548 = vunpack.c.l.b16 %v1354
  %v1549 = vunpack.c.h.b16 %v1354
  %v1550 = vunpack.c.l.b16 %v1355
  %v1551 = vunpack.c.h.b16 %v1355
  %v1552 = vunpack.c.l.b16 %v1356
  %v1553 = vunpack.c.h.b16 %v1356
  %v1554 = vunpack.c.l.b16 %v1357
  %v1555 = vunpack.c.h.b16 %v1357
  %v1556 = vpack.c.b16 %v1430, %v1428
  %v1557 = vpack.c.b16 %v1431, %v1429
  %v1558 = vpack.c.b16 %v1434, %v1432
  %v1559 = vpack.c.b16 %v1435, %v1433
  %v1560 = vpack.c.b16 %v1438, %v1436
  %v1561 = vpack.c.b16 %v1439, %v1437
  %v1562 = vpack.c.b16 %v1442, %v1440
  %v1563 = vpack.c.b16 %v1443, %v1441
  %v1564 = vpack.c.b16 %v1446, %v1444
  %v1565 = vpack.c.b16 %v1447, %v1445
  %v1566 = vpack.c.b16 %v1450, %v1448
  %v1567 = vpack.c.b16 %v1451, %v1449
  %v1568 = vpack.c.b16 %v1454, %v1452
  %v1569 = vpack.c.b16 %v1455, %v1453
  %v1570 = vpack.c.b16 %v1458, %v1456
  %v1571 = vpack.c.b16 %v1459, %v1457
  %v1572 = vpack.c.b16 %v1462, %v1460
  %v1573 = vpack.c.b16 %v1463, %v1461
  %v1574 = vpack.c.b16 %v1466, %v1464
  %v1575 = vpack.c.b16 %v1467, %v1465
  %v1576 = vpack.c.b16 %v1470, %v1468
  %v1577 = vpack.c.b16 %v1471, %v1469
  %v1578 = vpack.c.b16 %v1474, %v1472
  %v1579 = vpack.c.b16 %v1475, %v1473
  %v1580 = vpack.c.b16 %v1478, %v1476
  %v1581 = vpack.c.b16 %v1479, %v1477
  %v1582 = vpack.c.b16 %v1482, %v1480
  %v1583 = vpack.c.b16 %v1483, %v1481
  %v1584 = vpack.c.b16 %v1486, %v1484
  %v1585 = vpack.c.b16 %v1487, %v1485
  %v1586 = vpack.c.b16 %v1490, %v1488
  %v1587 = vpack.c.b16 %v1491, %v1489
  %v1588 = vpack.c.b16 %v1494, %v1492
  %v1589 = vpack.c.b16 %v1495, %v1493
  %v1590 = vpack.c.b16 %v1498, %v1496
  %v1591 = vpack.c.b16 %v1499, %v1497
  %v1592 = vpack.c.b16 %v1502, %v1500
  %v1593 = vpack.c.b16 %v1503, %v1501
  %v1594 = vpack.c.b16 %v1506, %v1504
  %v1595 = vpack.c.b16 %v1507, %v1505
  %v1596 = vpack.c.b16 %v1510, %v1508
  %v1597 = vpack.c.b16 %v1511, %v1509
  %v1598 = vpack.c.b16 %v1514, %v1512
  %v1599 = vpack.c.b16 %v1515, %v1513
  %v1600 = vpack.c.b16 %v1518, %v1516
  %v1601 = vpack.c.b16 %v1519, %v1517
  %v1602 = vpack.c.b16 %v1522, %v1520
  %v1603 = vpack.c.b16 %v1523, %v1521
  %v1604 = vpack.c.b16 %v1526, %v1524
  %v1605 = vpack.c.b16 %v1527, %v1525
  %v1606 = vpack.c.b16 %v1530, %v1528
  %v1607 = vpack.c.b16 %v1531, %v1529
  %v1608 = vpack.c.b16 %v1534, %v1532
  %v1609 = vpack.c.b16 %v1535, %v1533
  %v1610 = vpack.c.b16 %v1538, %v1536
  %v1611 = vpack.c.b16 %v1539, %v1537
  %v1612 = vpack.c.b16 %v1542, %v1540
  %v1613 = vpack.c.b16 %v1543, %v1541
  %v1614 = vpack.c.b16 %v1546, %v1544
  %v1615 = vpack.c.b16 %v1547, %v1545
  %v1616 = vpack.c.b16 %v1550, %v1548
  %v1617 = vpack.c.b16 %v1551, %v1549
  %v1618 = vpack.c.b16 %v1554, %v1552
  %v1619 = vpack.c.b16 %v1555, %v1553
  %1684 = vmatpush.bf16.msra.mxu0 %v1570
  %1685 = vmatpush.bf16.msra.mxu0 %v1568
  %1686 = vmatpush.bf16.msra.mxu0 %v1566
  %1687 = vmatpush.bf16.msra.mxu0 %v1564
  %1688 = vmatpush.bf16.msra.mxu0 %v1562
  %1689 = vmatpush.bf16.msra.mxu0 %v1560
  %1690 = vmatpush.bf16.msra.mxu0 %v1558
  %1691 = vmatpush.bf16.msra.mxu0 %v1556
  %1692 = vmatmul.bf16.gmra.mxu0 %v1290
  %v1693 = vpop.f32.mrf.mxu0
  %v1694 = vadd.f32 %v1360, %v1693
  %v1695 = vpop.f32.mrf.mxu0
  %1696 = vdwg.mxu0
  %1697 = vmatpush.bf16.msra.mxu0 %v1586
  %1698 = vmatpush.bf16.msra.mxu0 %v1584
  %1699 = vmatpush.bf16.msra.mxu0 %v1582
  %1700 = vmatpush.bf16.msra.mxu0 %v1580
  %1701 = vmatpush.bf16.msra.mxu0 %v1578
  %1702 = vmatpush.bf16.msra.mxu0 %v1576
  %1703 = vmatpush.bf16.msra.mxu0 %v1574
  %1704 = vmatpush.bf16.msra.mxu0 %v1572
  %1705 = vmatmul.bf16.gmra.mxu0 %v1291
  %v1706 = vpop.f32.mrf.mxu0
  %v1707 = vadd.f32 %v1694, %v1706
  %v1708 = vpop.f32.mrf.mxu0
  %1709 = vdwg.mxu0
  %1710 = vmatpush.bf16.msra.mxu0 %v1602
  %1711 = vmatpush.bf16.msra.mxu0 %v1600
  %1712 = vmatpush.bf16.msra.mxu0 %v1598
  %1713 = vmatpush.bf16.msra.mxu0 %v1596
  %1714 = vmatpush.bf16.msra.mxu0 %v1594
  %1715 = vmatpush.bf16.msra.mxu0 %v1592
  %1716 = vmatpush.bf16.msra.mxu0 %v1590
  %1717 = vmatpush.bf16.msra.mxu0 %v1588
  %1718 = vmatmul.bf16.gmra.mxu0 %v1292
  %v1719 = vpop.f32.mrf.mxu0
  %v1720 = vadd.f32 %v1707, %v1719
  %v1721 = vpop.f32.mrf.mxu0
  %1722 = vdwg.mxu0
  %1723 = vmatpush.bf16.msra.mxu0 %v1618
  %1724 = vmatpush.bf16.msra.mxu0 %v1616
  %1725 = vmatpush.bf16.msra.mxu0 %v1614
  %1726 = vmatpush.bf16.msra.mxu0 %v1612
  %1727 = vmatpush.bf16.msra.mxu0 %v1610
  %1728 = vmatpush.bf16.msra.mxu0 %v1608
  %1729 = vmatpush.bf16.msra.mxu0 %v1606
  %1730 = vmatpush.bf16.msra.mxu0 %v1604
  %1731 = vmatmul.bf16.gmra.mxu0 %v1293
  %v1732 = vpop.f32.mrf.mxu0
  %v1733 = vadd.f32 %v1720, %v1732
  %v1734 = vpop.f32.mrf.mxu0
  %1735 = vdwg.mxu0
  %1736 = vmatpush.bf16.msra.mxu0 %v1571
  %1737 = vmatpush.bf16.msra.mxu0 %v1569
  %1738 = vmatpush.bf16.msra.mxu0 %v1567
  %1739 = vmatpush.bf16.msra.mxu0 %v1565
  %1740 = vmatpush.bf16.msra.mxu0 %v1563
  %1741 = vmatpush.bf16.msra.mxu0 %v1561
  %1742 = vmatpush.bf16.msra.mxu0 %v1559
  %1743 = vmatpush.bf16.msra.mxu0 %v1557
  %1744 = vmatmul.bf16.gmra.mxu0 %v1290
  %v1745 = vpop.f32.mrf.mxu0
  %v1746 = vadd.f32 %v1361, %v1745
  %v1747 = vpop.f32.mrf.mxu0
  %1748 = vdwg.mxu0
  %1749 = vmatpush.bf16.msra.mxu0 %v1587
  %1750 = vmatpush.bf16.msra.mxu0 %v1585
  %1751 = vmatpush.bf16.msra.mxu0 %v1583
  %1752 = vmatpush.bf16.msra.mxu0 %v1581
  %1753 = vmatpush.bf16.msra.mxu0 %v1579
  %1754 = vmatpush.bf16.msra.mxu0 %v1577
  %1755 = vmatpush.bf16.msra.mxu0 %v1575
  %1756 = vmatpush.bf16.msra.mxu0 %v1573
  %1757 = vmatmul.bf16.gmra.mxu0 %v1291
  %v1758 = vpop.f32.mrf.mxu0
  %v1759 = vadd.f32 %v1746, %v1758
  %v1760 = vpop.f32.mrf.mxu0
  %1761 = vdwg.mxu0
  %1762 = vmatpush.bf16.msra.mxu0 %v1603
  %1763 = vmatpush.bf16.msra.mxu0 %v1601
  %1764 = vmatpush.bf16.msra.mxu0 %v1599
  %1765 = vmatpush.bf16.msra.mxu0 %v1597
  %1766 = vmatpush.bf16.msra.mxu0 %v1595
  %1767 = vmatpush.bf16.msra.mxu0 %v1593
  %1768 = vmatpush.bf16.msra.mxu0 %v1591
  %1769 = vmatpush.bf16.msra.mxu0 %v1589
  %1770 = vmatmul.bf16.gmra.mxu0 %v1292
  %v1771 = vpop.f32.mrf.mxu0
  %v1772 = vadd.f32 %v1759, %v1771
  %v1773 = vpop.f32.mrf.mxu0
  %1774 = vdwg.mxu0
  %1775 = vmatpush.bf16.msra.mxu0 %v1619
  %1776 = vmatpush.bf16.msra.mxu0 %v1617
  %1777 = vmatpush.bf16.msra.mxu0 %v1615
  %1778 = vmatpush.bf16.msra.mxu0 %v1613
  %1779 = vmatpush.bf16.msra.mxu0 %v1611
  %1780 = vmatpush.bf16.msra.mxu0 %v1609
  %1781 = vmatpush.bf16.msra.mxu0 %v1607
  %1782 = vmatpush.bf16.msra.mxu0 %v1605
  %1783 = vmatmul.bf16.gmra.mxu0 %v1293
  %v1784 = vpop.f32.mrf.mxu0
  %v1785 = vadd.f32 %v1772, %v1784
  %v1786 = vpop.f32.mrf.mxu0
  %1787 = vdwg.mxu0
  %vm1788 = vcmp.gt.f32.partialorder %v1733, 0.0
  %vm1789 = vcmp.gt.f32.partialorder %v1785, 0.0
  %v1790 = vmul.f32 %v1733, 0.01
  %v1791 = vmul.f32 %v1785, 0.01
  %v1792 = vsel %vm1788, %v1733, %v1790
  %v1793 = vsel %vm1789, %v1785, %v1791
  %v1794 = vpack.c.bf16 %v1792, %v1792
  %v1795 = vpack.c.bf16 %v1793, %v1793
  %v1796 = vld [vmem:[%s8] sm:$0xf]
  %v1797 = vld [vmem:[%s8 + $0x4] sm:$0xf]
  %v1798 = vld [vmem:[%s8 + $0x8] sm:$0xf]
  %v1799 = vld [vmem:[%s8 + $0xc] sm:$0xf]
  %v1800 = vld [vmem:[%s8 + $0x10] sm:$0xf]
  %v1801 = vld [vmem:[%s8 + $0x14] sm:$0xf]
  %v1802 = vld [vmem:[%s8 + $0x18] sm:$0xf]
  %v1803 = vld [vmem:[%s8 + $0x1c] sm:$0xf]
  %v1804 = vld [vmem:[%s8 + $0x20] sm:$0xf]
  %v1805 = vld [vmem:[%s8 + $0x24] sm:$0xf]
  %v1806 = vld [vmem:[%s8 + $0x28] sm:$0xf]
  %v1807 = vld [vmem:[%s8 + $0x2c] sm:$0xf]
  %v1808 = vld [vmem:[%s8 + $0x30] sm:$0xf]
  %v1809 = vld [vmem:[%s8 + $0x34] sm:$0xf]
  %v1810 = vld [vmem:[%s8 + $0x38] sm:$0xf]
  %v1811 = vld [vmem:[%s8 + $0x3c] sm:$0xf]
  %v1812 = vld [vmem:[%s8 + $0x40] sm:$0xf]
  %v1813 = vld [vmem:[%s8 + $0x44] sm:$0xf]
  %v1814 = vld [vmem:[%s8 + $0x48] sm:$0xf]
  %v1815 = vld [vmem:[%s8 + $0x4c] sm:$0xf]
  %v1816 = vld [vmem:[%s8 + $0x50] sm:$0xf]
  %v1817 = vld [vmem:[%s8 + $0x54] sm:$0xf]
  %v1818 = vld [vmem:[%s8 + $0x58] sm:$0xf]
  %v1819 = vld [vmem:[%s8 + $0x5c] sm:$0xf]
  %v1820 = vld [vmem:[%s8 + $0x60] sm:$0xf]
  %v1821 = vld [vmem:[%s8 + $0x64] sm:$0xf]
  %v1822 = vld [vmem:[%s8 + $0x68] sm:$0xf]
  %v1823 = vld [vmem:[%s8 + $0x6c] sm:$0xf]
  %v1824 = vld [vmem:[%s8 + $0x70] sm:$0xf]
  %v1825 = vld [vmem:[%s8 + $0x74] sm:$0xf]
  %v1826 = vld [vmem:[%s8 + $0x78] sm:$0xf]
  %v1827 = vld [vmem:[%s8 + $0x7c] sm:$0xf]
  %v1828 = vld [vmem:[%s9] sm:$0x1]
  %v1830 = vperm.slane %v1828, 0
  %v1864 = vunpack.c.l.b16 %v1796
  %v1865 = vunpack.c.l.b16 %v1797
  %v1866 = vunpack.c.l.b16 %v1798
  %v1867 = vunpack.c.l.b16 %v1799
  %v1868 = vunpack.c.l.b16 %v1800
  %v1869 = vunpack.c.l.b16 %v1801
  %v1870 = vunpack.c.l.b16 %v1802
  %v1871 = vunpack.c.l.b16 %v1803
  %v1872 = vunpack.c.l.b16 %v1804
  %v1873 = vunpack.c.l.b16 %v1805
  %v1874 = vunpack.c.l.b16 %v1806
  %v1875 = vunpack.c.l.b16 %v1807
  %v1876 = vunpack.c.l.b16 %v1808
  %v1877 = vunpack.c.l.b16 %v1809
  %v1878 = vunpack.c.l.b16 %v1810
  %v1879 = vunpack.c.l.b16 %v1811
  %v1880 = vunpack.c.l.b16 %v1812
  %v1881 = vunpack.c.l.b16 %v1813
  %v1882 = vunpack.c.l.b16 %v1814
  %v1883 = vunpack.c.l.b16 %v1815
  %v1884 = vunpack.c.l.b16 %v1816
  %v1885 = vunpack.c.l.b16 %v1817
  %v1886 = vunpack.c.l.b16 %v1818
  %v1887 = vunpack.c.l.b16 %v1819
  %v1888 = vunpack.c.l.b16 %v1820
  %v1889 = vunpack.c.l.b16 %v1821
  %v1890 = vunpack.c.l.b16 %v1822
  %v1891 = vunpack.c.l.b16 %v1823
  %v1892 = vunpack.c.l.b16 %v1824
  %v1893 = vunpack.c.l.b16 %v1825
  %v1894 = vunpack.c.l.b16 %v1826
  %v1895 = vunpack.c.l.b16 %v1827
  %v1896 = vpack.c.b16 %v1865, %v1864
  %v1897 = vpack.c.b16 %v1867, %v1866
  %v1898 = vpack.c.b16 %v1869, %v1868
  %v1899 = vpack.c.b16 %v1871, %v1870
  %v1900 = vpack.c.b16 %v1873, %v1872
  %v1901 = vpack.c.b16 %v1875, %v1874
  %v1902 = vpack.c.b16 %v1877, %v1876
  %v1903 = vpack.c.b16 %v1879, %v1878
  %v1904 = vpack.c.b16 %v1881, %v1880
  %v1905 = vpack.c.b16 %v1883, %v1882
  %v1906 = vpack.c.b16 %v1885, %v1884
  %v1907 = vpack.c.b16 %v1887, %v1886
  %v1908 = vpack.c.b16 %v1889, %v1888
  %v1909 = vpack.c.b16 %v1891, %v1890
  %v1910 = vpack.c.b16 %v1893, %v1892
  %v1911 = vpack.c.b16 %v1895, %v1894
  %1928 = vmatpush.bf16.msra.mxu0 %v1903
  %1929 = vmatpush.bf16.msra.mxu0 %v1902
  %1930 = vmatpush.bf16.msra.mxu0 %v1901
  %1931 = vmatpush.bf16.msra.mxu0 %v1900
  %1932 = vmatpush.bf16.msra.mxu0 %v1899
  %1933 = vmatpush.bf16.msra.mxu0 %v1898
  %1934 = vmatpush.bf16.msra.mxu0 %v1897
  %1935 = vmatpush.bf16.msra.mxu0 %v1896
  %1936 = vmatmul.bf16.gmra.mxu0 %v1794
  %v1937 = vpop.f32.mrf.mxu0
  %v1938 = vadd.f32 %v1830, %v1937
  %v1939 = vpop.f32.mrf.mxu0
  %1940 = vdwg.mxu0
  %1941 = vmatpush.bf16.msra.mxu0 %v1911
  %1942 = vmatpush.bf16.msra.mxu0 %v1910
  %1943 = vmatpush.bf16.msra.mxu0 %v1909
  %1944 = vmatpush.bf16.msra.mxu0 %v1908
  %1945 = vmatpush.bf16.msra.mxu0 %v1907
  %1946 = vmatpush.bf16.msra.mxu0 %v1906
  %1947 = vmatpush.bf16.msra.mxu0 %v1905
  %1948 = vmatpush.bf16.msra.mxu0 %v1904
  %1949 = vmatmul.bf16.gmra.mxu0 %v1795
  %v1950 = vpop.f32.mrf.mxu0
  %v1951 = vadd.f32 %v1938, %v1950
  %v1952 = vpop.f32.mrf.mxu0
  %1953 = vdwg.mxu0
  %1954 = vst [vmem:[%s10] sm:$0xff] %v1951
  // Predicated region
  $region38: #{dropout_mlp.1} parent=0 // pred_check
    _
  $region39: #{dropout_mlp.1} parent=0 // pred_check_branch
    %1956 = sbr.rel (0) target = $region41
  $region40: #{dropout_mlp.1} parent=0 // pred_region
    _
  $region41: #{dropout_mlp.1} parent=0 // pred_fallthru
    _
  // Predicated region
  $region42: #{dropout_mlp.1} parent=0 // pred_check
    _
  $region43: #{dropout_mlp.1} parent=0 // pred_check_branch
    %1958 = sbr.rel (0) target = $region45
  $region44: #{dropout_mlp.1} parent=0 // pred_region
    _
  $region45: #{dropout_mlp.1} parent=0 // pred_fallthru
    _

</llo_original>
